<compile_context>
chip_gen: v6e
topology: v6e:2x2x1
jax: 0.10.0
libtpu: 0.0.40
codegen_flags: <defaults>
</compile_context>

<pallas_src>
import jax
import jax.numpy as jnp
from jax.experimental import pallas as pl
from jax.experimental.pallas import tpu as pltpu


def _swish(x):
    # swish / SiLU: x * sigmoid(x); exp lowers to the EUP inside the kernel.
    return x * (1.0 / (1.0 + jnp.exp(-x)))


def attention_heads_kernel(xi_ref, xj_ref, d_ref, env_ref,
                           mu_ref, beta_ref,
                           wq_ref, bq_ref, wk_ref, bk_ref, wdk_ref, bdk_ref,
                           hmask_ref, out_ref):
    # Grouped Conv1d(kernel_size=1) on a head-repeated input == dense matmul.
    q = jnp.dot(xi_ref[...], wq_ref[...],
                preferred_element_type=jnp.float32) + bq_ref[...]            # (TE, H*F)
    k = jnp.dot(xj_ref[...], wk_ref[...],
                preferred_element_type=jnp.float32) + bk_ref[...]            # (TE, H*F)

    # Exp-normal radial basis * cosine envelope, built in-kernel from two
    # per-edge scalars (EUP exps; broadcast (TE,1) x (1,R) -> (TE,R)).
    d = d_ref[...]                                                           # (TE, 1)
    ef = jnp.exp(-beta_ref[...] * (jnp.exp(-d) - mu_ref[...]) ** 2) * env_ref[...]  # (TE, R)

    dk = _swish(jnp.dot(ef, wdk_ref[...],
                        preferred_element_type=jnp.float32) + bdk_ref[...])  # (TE, H*F)

    prod = q * k * dk                                                        # (TE, H*F)

    # Per-head reduction as a (H*F, H) 0/1 matmul: stays on the MXU and avoids
    # an awkward (TE, H, F) relayout + XLU lane reduce.
    head_sum = jnp.dot(prod, hmask_ref[...],
                       preferred_element_type=jnp.float32)                   # (TE, H)
    out_ref[...] = _swish(head_sum).astype(out_ref.dtype)


def attention_heads(dist, nbrs, x_i, wq, bq, wk, bk, wdk, bdk, mu, beta, cutoff,
                    *, edge_tile=1024):
    """dist: (E,), nbrs: (E, 2) int, x_i: (N, F).
    wq/wk: (H*F, F) and wdk: (H*F, R) -- grouped Conv1d weights with the
    kernel_size=1 axis squeezed; biases: (H*F,); mu/beta: (R,); cutoff: float."""
    E = dist.shape[0]
    _, F = x_i.shape
    HF = wq.shape[0]
    R = mu.shape[0]
    H = HF // F
    f32 = jnp.float32

    dist = dist.astype(f32)

    # --- wrapper-side preprocessing ----------------------------------------
    # TODO(synk): the per-edge row gathers and the cosine envelope stay in XLA;
    # data-dependent gather has no efficient in-kernel path and cos lowering in
    # Mosaic is not guaranteed.  This is cheap elementwise/gather work.
    x_i_nbrs = jnp.take(x_i, nbrs[:, 0].astype(jnp.int32), axis=0).astype(f32)   # (E, F)
    x_j = jnp.take(x_i, nbrs[:, 1].astype(jnp.int32), axis=0).astype(f32)        # (E, F)
    env = (0.5 * (jnp.cos(jnp.pi * dist / cutoff) + 1.0)
           * (dist < cutoff).astype(f32)).reshape(E, 1)                           # (E, 1)
    dist2d = dist.reshape(E, 1)                                                   # (E, 1)

    # --- edge tiling: big tiles for large E, no over-padding for small E ----
    e_rounded = max(8, ((E + 7) // 8) * 8)
    TE = int(min(int(edge_tile), e_rounded))
    TE = max(8, (TE // 8) * 8)               # (8,128) rule on the sublane axis
    n_tiles = pl.cdiv(E, TE)
    E_pad = n_tiles * TE
    pad = E_pad - E
    if pad:
        x_i_nbrs = jnp.pad(x_i_nbrs, ((0, pad), (0, 0)))
        x_j = jnp.pad(x_j, ((0, pad), (0, 0)))
        dist2d = jnp.pad(dist2d, ((0, pad), (0, 0)))
        env = jnp.pad(env, ((0, pad), (0, 0)))

    # Grouped conv weights -> dense matmul layout (input is head-repeated).
    wq_m = wq.T.astype(f32)     # (F, H*F)
    wk_m = wk.T.astype(f32)     # (F, H*F)
    wdk_m = wdk.T.astype(f32)   # (R, H*F)
    bq_m = bq.reshape(1, HF).astype(f32)
    bk_m = bk.reshape(1, HF).astype(f32)
    bdk_m = bdk.reshape(1, HF).astype(f32)
    mu_m = mu.reshape(1, R).astype(f32)
    beta_m = beta.reshape(1, R).astype(f32)
    head_mask = (jnp.arange(HF, dtype=jnp.int32)[:, None] // F
                 == jnp.arange(H, dtype=jnp.int32)[None, :]).astype(f32)          # (H*F, H)

    edge_spec_F = pl.BlockSpec((TE, F), lambda i: (i, 0))
    edge_spec_1 = pl.BlockSpec((TE, 1), lambda i: (i, 0))
    resident = lambda shape: pl.BlockSpec(shape, lambda i: (0, 0))  # DMA once, stays in VMEM

    out = pl.pallas_call(
        attention_heads_kernel,
        out_shape=jax.ShapeDtypeStruct((E_pad, H), x_i.dtype),
        grid=(n_tiles,),
        in_specs=[
            edge_spec_F,                               # x_i_nbrs tile
            edge_spec_F,                               # x_j tile
            edge_spec_1,                               # dist tile
            edge_spec_1,                               # cosine-envelope tile
            resident((1, R)), resident((1, R)),        # mu, beta
            resident((F, HF)), resident((1, HF)),      # W_q, b_q
            resident((F, HF)), resident((1, HF)),      # W_k, b_k
            resident((R, HF)), resident((1, HF)),      # W_dk, b_dk
            resident((HF, H)),                         # per-head sum mask
        ],
        out_specs=pl.BlockSpec((TE, H), lambda i: (i, 0)),
        compiler_params=pltpu.CompilerParams(
            dimension_semantics=("parallel",)),
    )(x_i_nbrs, x_j, dist2d, env, mu_m, beta_m,
      wq_m, bq_m, wk_m, bk_m, wdk_m, bdk_m, head_mask)

    return out[:E]


if __name__ == "__main__":
    # Small, deterministic example shapes consistent with the module.
    num_heads = 4
    feat_dim = 32
    n_rbf = 16
    cutoff = 5.0
    num_nodes = 16
    num_edges = 200            # deliberately not a multiple of a big edge tile
    hf = num_heads * feat_dim

    key = jax.random.PRNGKey(0)
    (k_nbr, k_d, k_x, k_wq, k_wk, k_wdk, k_bq, k_bk, k_bdk) = jax.random.split(key, 9)

    nbrs = jax.random.randint(k_nbr, (num_edges, 2), 0, num_nodes, dtype=jnp.int32)
    dist = jax.random.uniform(k_d, (num_edges,), minval=0.1, maxval=1.2 * cutoff,
                              dtype=jnp.float32)
    x_i = jax.random.normal(k_x, (num_nodes, feat_dim), dtype=jnp.float32)

    # Deterministic parameters (PyTorch grouped-Conv1d shape conventions).
    wq = jax.random.normal(k_wq, (hf, feat_dim), jnp.float32) / jnp.sqrt(feat_dim)
    wk = jax.random.normal(k_wk, (hf, feat_dim), jnp.float32) / jnp.sqrt(feat_dim)
    wdk = jax.random.normal(k_wdk, (hf, n_rbf), jnp.float32) / jnp.sqrt(n_rbf)
    bq = 0.01 * jax.random.normal(k_bq, (hf,), jnp.float32)
    bk = 0.01 * jax.random.normal(k_bk, (hf,), jnp.float32)
    bdk = 0.01 * jax.random.normal(k_bdk, (hf,), jnp.float32)

    mu = jnp.linspace(float(jnp.exp(-cutoff)), 1.0, n_rbf, dtype=jnp.float32)
    beta = jnp.full((n_rbf,),
                    float((2.0 / n_rbf * (1.0 - jnp.exp(-cutoff))) ** -2),
                    dtype=jnp.float32)

    out = attention_heads(dist, nbrs, x_i, wq, bq, wk, bk, wdk, bdk, mu, beta, cutoff)
    out = jax.block_until_ready(out)

    # Pure-JAX reference mirroring the PyTorch forward.
    x_i_nbrs = x_i[nbrs[:, 0]]
    x_j = x_i[nbrs[:, 1]]
    rbf = jnp.exp(-beta[None, :] * (jnp.exp(-dist)[:, None] - mu[None, :]) ** 2)
    env = 0.5 * (jnp.cos(jnp.pi * dist / cutoff) + 1.0) * (dist < cutoff).astype(jnp.float32)
    edge_feats = rbf * env[:, None]
    q_ref = x_i_nbrs @ wq.T + bq
    k_ref = x_j @ wk.T + bk
    dk_ref = _swish(edge_feats @ wdk.T + bdk)
    prod_ref = (q_ref * k_ref * dk_ref).reshape(num_edges, num_heads, feat_dim)
    ref = _swish(prod_ref.sum(-1))

    if out.shape != (num_edges, num_heads):
        raise AssertionError(f"Pallas AttentionHeads bad output shape: {out.shape}")
    if not jnp.allclose(out, ref, atol=5e-4, rtol=5e-4):
        err = float(jnp.max(jnp.abs(out - ref)))
        raise AssertionError(
            f"Pallas AttentionHeads output mismatch vs reference (max abs err {err})")

    print("KERNEL_OK")
</pallas_src>

<mosaic_0001>
module attributes {stable_mosaic.version = 11 : i64} {
  func.func @attention_heads_kernel(%arg0: i32, %arg1: memref<200x32xf32, #tpu.memory_space<vmem>>, %arg2: memref<200x32xf32, #tpu.memory_space<vmem>>, %arg3: memref<200x1xf32, #tpu.memory_space<vmem>>, %arg4: memref<200x1xf32, #tpu.memory_space<vmem>>, %arg5: memref<1x16xf32, #tpu.memory_space<vmem>>, %arg6: memref<1x16xf32, #tpu.memory_space<vmem>>, %arg7: memref<32x128xf32, #tpu.memory_space<vmem>>, %arg8: memref<1x128xf32, #tpu.memory_space<vmem>>, %arg9: memref<32x128xf32, #tpu.memory_space<vmem>>, %arg10: memref<1x128xf32, #tpu.memory_space<vmem>>, %arg11: memref<16x128xf32, #tpu.memory_space<vmem>>, %arg12: memref<1x128xf32, #tpu.memory_space<vmem>>, %arg13: memref<128x4xf32, #tpu.memory_space<vmem>>, %arg14: memref<200x4xf32, #tpu.memory_space<vmem>>) attributes {dimension_semantics = [#tpu.dimension_semantics<parallel>], iteration_bounds = array<i64: 1>, scalar_prefetch = 0 : i64, scratch_operands = 0 : i64, tpu.core_type = #tpu.core_type<tc>, window_params = [{transform_indices = @transform_0, window_bounds = array<i64: 200, 32>}, {transform_indices = @transform_1, window_bounds = array<i64: 200, 32>}, {transform_indices = @transform_2, window_bounds = array<i64: 200, 1>}, {transform_indices = @transform_3, window_bounds = array<i64: 200, 1>}, {pipeline_mode = #tpu.pipeline_mode<synchronous>, transform_indices = @transform_4, window_bounds = array<i64: 1, 16>}, {pipeline_mode = #tpu.pipeline_mode<synchronous>, transform_indices = @transform_5, window_bounds = array<i64: 1, 16>}, {pipeline_mode = #tpu.pipeline_mode<synchronous>, transform_indices = @transform_6, window_bounds = array<i64: 32, 128>}, {pipeline_mode = #tpu.pipeline_mode<synchronous>, transform_indices = @transform_7, window_bounds = array<i64: 1, 128>}, {pipeline_mode = #tpu.pipeline_mode<synchronous>, transform_indices = @transform_8, window_bounds = array<i64: 32, 128>}, {pipeline_mode = #tpu.pipeline_mode<synchronous>, transform_indices = @transform_9, window_bounds = array<i64: 1, 128>}, {pipeline_mode = #tpu.pipeline_mode<synchronous>, transform_indices = @transform_10, window_bounds = array<i64: 16, 128>}, {pipeline_mode = #tpu.pipeline_mode<synchronous>, transform_indices = @transform_11, window_bounds = array<i64: 1, 128>}, {pipeline_mode = #tpu.pipeline_mode<synchronous>, transform_indices = @transform_12, window_bounds = array<i64: 128, 4>}, {transform_indices = @transform_13, window_bounds = array<i64: 200, 4>}]} {
    %c0 = arith.constant 0 : index
    %c0_0 = arith.constant 0 : index
    %0 = vector.load %arg1[%c0, %c0_0] : memref<200x32xf32, #tpu.memory_space<vmem>>, vector<200x32xf32>
    %c0_1 = arith.constant 0 : index
    %c0_2 = arith.constant 0 : index
    %1 = vector.load %arg7[%c0_1, %c0_2] : memref<32x128xf32, #tpu.memory_space<vmem>>, vector<32x128xf32>
    %cst = arith.constant dense<0.000000e+00> : vector<200x128xf32>
    %2 = tpu.matmul %0, %1, %cst {dimension_numbers = #tpu.dot_dimension_numbers<[1], [0], [0], [1], [0, 0, 1, 1], [], []>} : vector<200x32xf32>, vector<32x128xf32>, vector<200x128xf32> -> vector<200x128xf32>
    %c0_3 = arith.constant 0 : index
    %c0_4 = arith.constant 0 : index
    %3 = vector.load %arg8[%c0_3, %c0_4] : memref<1x128xf32, #tpu.memory_space<vmem>>, vector<1x128xf32>
    %4 = vector.broadcast %3 : vector<1x128xf32> to vector<200x128xf32>
    %5 = arith.addf %2, %4 : vector<200x128xf32>
    %c0_5 = arith.constant 0 : index
    %c0_6 = arith.constant 0 : index
    %6 = vector.load %arg2[%c0_5, %c0_6] : memref<200x32xf32, #tpu.memory_space<vmem>>, vector<200x32xf32>
    %c0_7 = arith.constant 0 : index
    %c0_8 = arith.constant 0 : index
    %7 = vector.load %arg9[%c0_7, %c0_8] : memref<32x128xf32, #tpu.memory_space<vmem>>, vector<32x128xf32>
    %cst_9 = arith.constant dense<0.000000e+00> : vector<200x128xf32>
    %8 = tpu.matmul %6, %7, %cst_9 {dimension_numbers = #tpu.dot_dimension_numbers<[1], [0], [0], [1], [0, 0, 1, 1], [], []>} : vector<200x32xf32>, vector<32x128xf32>, vector<200x128xf32> -> vector<200x128xf32>
    %c0_10 = arith.constant 0 : index
    %c0_11 = arith.constant 0 : index
    %9 = vector.load %arg10[%c0_10, %c0_11] : memref<1x128xf32, #tpu.memory_space<vmem>>, vector<1x128xf32>
    %10 = vector.broadcast %9 : vector<1x128xf32> to vector<200x128xf32>
    %11 = arith.addf %8, %10 : vector<200x128xf32>
    %c0_12 = arith.constant 0 : index
    %c0_13 = arith.constant 0 : index
    %12 = vector.load %arg3[%c0_12, %c0_13] : memref<200x1xf32, #tpu.memory_space<vmem>>, vector<200x1xf32>
    %c0_14 = arith.constant 0 : index
    %c0_15 = arith.constant 0 : index
    %13 = vector.load %arg6[%c0_14, %c0_15] : memref<1x16xf32, #tpu.memory_space<vmem>>, vector<1x16xf32>
    %cst_16 = arith.constant 0.000000e+00 : f32
    %14 = vector.broadcast %cst_16 : f32 to vector<1x16xf32>
    %15 = arith.subf %14, %13 : vector<1x16xf32>
    %cst_17 = arith.constant 0.000000e+00 : f32
    %16 = vector.broadcast %cst_17 : f32 to vector<200x1xf32>
    %17 = arith.subf %16, %12 : vector<200x1xf32>
    %18 = math.exp %17 : vector<200x1xf32>
    %c0_18 = arith.constant 0 : index
    %c0_19 = arith.constant 0 : index
    %19 = vector.load %arg5[%c0_18, %c0_19] : memref<1x16xf32, #tpu.memory_space<vmem>>, vector<1x16xf32>
    %20 = vector.broadcast %18 : vector<200x1xf32> to vector<200x16xf32>
    %21 = vector.broadcast %19 : vector<1x16xf32> to vector<200x16xf32>
    %22 = arith.subf %20, %21 : vector<200x16xf32>
    %23 = arith.mulf %22, %22 : vector<200x16xf32>
    %24 = vector.broadcast %15 : vector<1x16xf32> to vector<200x16xf32>
    %25 = arith.mulf %24, %23 : vector<200x16xf32>
    %26 = math.exp %25 : vector<200x16xf32>
    %c0_20 = arith.constant 0 : index
    %c0_21 = arith.constant 0 : index
    %27 = vector.load %arg4[%c0_20, %c0_21] : memref<200x1xf32, #tpu.memory_space<vmem>>, vector<200x1xf32>
    %28 = vector.broadcast %27 : vector<200x1xf32> to vector<200x16xf32>
    %29 = arith.mulf %26, %28 : vector<200x16xf32>
    %c0_22 = arith.constant 0 : index
    %c0_23 = arith.constant 0 : index
    %30 = vector.load %arg11[%c0_22, %c0_23] : memref<16x128xf32, #tpu.memory_space<vmem>>, vector<16x128xf32>
    %cst_24 = arith.constant dense<0.000000e+00> : vector<200x128xf32>
    %31 = tpu.matmul %29, %30, %cst_24 {dimension_numbers = #tpu.dot_dimension_numbers<[1], [0], [0], [1], [0, 0, 1, 1], [], []>} : vector<200x16xf32>, vector<16x128xf32>, vector<200x128xf32> -> vector<200x128xf32>
    %c0_25 = arith.constant 0 : index
    %c0_26 = arith.constant 0 : index
    %32 = vector.load %arg12[%c0_25, %c0_26] : memref<1x128xf32, #tpu.memory_space<vmem>>, vector<1x128xf32>
    %33 = vector.broadcast %32 : vector<1x128xf32> to vector<200x128xf32>
    %34 = arith.addf %31, %33 : vector<200x128xf32>
    %cst_27 = arith.constant 0.000000e+00 : f32
    %35 = vector.broadcast %cst_27 : f32 to vector<200x128xf32>
    %36 = arith.subf %35, %34 : vector<200x128xf32>
    %37 = math.exp %36 : vector<200x128xf32>
    %cst_28 = arith.constant 1.000000e+00 : f32
    %38 = vector.broadcast %cst_28 : f32 to vector<200x128xf32>
    %39 = arith.addf %38, %37 : vector<200x128xf32>
    %cst_29 = arith.constant 1.000000e+00 : f32
    %40 = vector.broadcast %cst_29 : f32 to vector<200x128xf32>
    %41 = arith.divf %40, %39 : vector<200x128xf32>
    %42 = arith.mulf %34, %41 : vector<200x128xf32>
    %43 = arith.mulf %5, %11 : vector<200x128xf32>
    %44 = arith.mulf %43, %42 : vector<200x128xf32>
    %c0_30 = arith.constant 0 : index
    %c0_31 = arith.constant 0 : index
    %45 = vector.load %arg13[%c0_30, %c0_31] : memref<128x4xf32, #tpu.memory_space<vmem>>, vector<128x4xf32>
    %cst_32 = arith.constant dense<0.000000e+00> : vector<200x4xf32>
    %46 = tpu.matmul %44, %45, %cst_32 {dimension_numbers = #tpu.dot_dimension_numbers<[1], [0], [0], [1], [0, 0, 1, 1], [], []>} : vector<200x128xf32>, vector<128x4xf32>, vector<200x4xf32> -> vector<200x4xf32>
    %cst_33 = arith.constant 0.000000e+00 : f32
    %47 = vector.broadcast %cst_33 : f32 to vector<200x4xf32>
    %48 = arith.subf %47, %46 : vector<200x4xf32>
    %49 = math.exp %48 : vector<200x4xf32>
    %cst_34 = arith.constant 1.000000e+00 : f32
    %50 = vector.broadcast %cst_34 : f32 to vector<200x4xf32>
    %51 = arith.addf %50, %49 : vector<200x4xf32>
    %cst_35 = arith.constant 1.000000e+00 : f32
    %52 = vector.broadcast %cst_35 : f32 to vector<200x4xf32>
    %53 = arith.divf %52, %51 : vector<200x4xf32>
    %54 = arith.mulf %46, %53 : vector<200x4xf32>
    %c0_36 = arith.constant 0 : index
    %c0_37 = arith.constant 0 : index
    %55 = vector.load %arg14[%c0_36, %c0_37] : memref<200x4xf32, #tpu.memory_space<vmem>>, vector<200x4xf32>
    tpu.vector_store %arg14[%c0_36, %c0_37], %54 {strides = array<i32>} : memref<200x4xf32, #tpu.memory_space<vmem>>, vector<200x4xf32>,
    return
  }
  func.func @transform_0(%arg0: i32) -> (i32, i32) {
    %c0_i32 = arith.constant 0 : i32
    %c0_i32_0 = arith.constant 0 : i32
    return %arg0, %c0_i32 : i32, i32
  }
  func.func @transform_1(%arg0: i32) -> (i32, i32) {
    %c0_i32 = arith.constant 0 : i32
    %c0_i32_0 = arith.constant 0 : i32
    return %arg0, %c0_i32 : i32, i32
  }
  func.func @transform_2(%arg0: i32) -> (i32, i32) {
    %c0_i32 = arith.constant 0 : i32
    %c0_i32_0 = arith.constant 0 : i32
    return %arg0, %c0_i32 : i32, i32
  }
  func.func @transform_3(%arg0: i32) -> (i32, i32) {
    %c0_i32 = arith.constant 0 : i32
    %c0_i32_0 = arith.constant 0 : i32
    return %arg0, %c0_i32 : i32, i32
  }
  func.func @transform_4(%arg0: i32) -> (i32, i32) {
    %c0_i32 = arith.constant 0 : i32
    %c0_i32_0 = arith.constant 0 : i32
    %c0_i32_1 = arith.constant 0 : i32
    return %c0_i32, %c0_i32_0 : i32, i32
  }
  func.func @transform_5(%arg0: i32) -> (i32, i32) {
    %c0_i32 = arith.constant 0 : i32
    %c0_i32_0 = arith.constant 0 : i32
    %c0_i32_1 = arith.constant 0 : i32
    return %c0_i32, %c0_i32_0 : i32, i32
  }
  func.func @transform_6(%arg0: i32) -> (i32, i32) {
    %c0_i32 = arith.constant 0 : i32
    %c0_i32_0 = arith.constant 0 : i32
    %c0_i32_1 = arith.constant 0 : i32
    return %c0_i32, %c0_i32_0 : i32, i32
  }
  func.func @transform_7(%arg0: i32) -> (i32, i32) {
    %c0_i32 = arith.constant 0 : i32
    %c0_i32_0 = arith.constant 0 : i32
    %c0_i32_1 = arith.constant 0 : i32
    return %c0_i32, %c0_i32_0 : i32, i32
  }
  func.func @transform_8(%arg0: i32) -> (i32, i32) {
    %c0_i32 = arith.constant 0 : i32
    %c0_i32_0 = arith.constant 0 : i32
    %c0_i32_1 = arith.constant 0 : i32
    return %c0_i32, %c0_i32_0 : i32, i32
  }
  func.func @transform_9(%arg0: i32) -> (i32, i32) {
    %c0_i32 = arith.constant 0 : i32
    %c0_i32_0 = arith.constant 0 : i32
    %c0_i32_1 = arith.constant 0 : i32
    return %c0_i32, %c0_i32_0 : i32, i32
  }
  func.func @transform_10(%arg0: i32) -> (i32, i32) {
    %c0_i32 = arith.constant 0 : i32
    %c0_i32_0 = arith.constant 0 : i32
    %c0_i32_1 = arith.constant 0 : i32
    return %c0_i32, %c0_i32_0 : i32, i32
  }
  func.func @transform_11(%arg0: i32) -> (i32, i32) {
    %c0_i32 = arith.constant 0 : i32
    %c0_i32_0 = arith.constant 0 : i32
    %c0_i32_1 = arith.constant 0 : i32
    return %c0_i32, %c0_i32_0 : i32, i32
  }
  func.func @transform_12(%arg0: i32) -> (i32, i32) {
    %c0_i32 = arith.constant 0 : i32
    %c0_i32_0 = arith.constant 0 : i32
    %c0_i32_1 = arith.constant 0 : i32
    return %c0_i32, %c0_i32_0 : i32, i32
  }
  func.func @transform_13(%arg0: i32) -> (i32, i32) {
    %c0_i32 = arith.constant 0 : i32
    %c0_i32_0 = arith.constant 0 : i32
    return %arg0, %c0_i32 : i32, i32
  }
}

</mosaic_0001>

<llo_original>
// kernel: tpu_custom_call.1
$region0: #{tpu_custom_call.1}
  #allocation0 [shape = 'u32[]', space=smem, size = 0x4, offset = 0x4, fixed_abs, tag = 'smem constant byte address 0x4 - core index']
  #allocation1 [shape = 'u32[144,128]{1,0:T(1,128)}', space=vmem, size = 0x12000, scoped, tag = 'internal scratch']
  %s0 = inlined_call_operand.vmem [shape: f32[200,32], index: 0, kind: input, shape index: {}]
  %s1 = inlined_call_operand.vmem [shape: f32[200,32], index: 1, kind: input, shape index: {}]
  %s2 = inlined_call_operand.vmem [shape: f32[200,1], index: 2, kind: input, shape index: {}]
  %s3 = inlined_call_operand.vmem [shape: f32[200,1], index: 3, kind: input, shape index: {}]
  %s4 = inlined_call_operand.vmem [shape: f32[1,16], index: 4, kind: input, shape index: {}]
  %s5 = inlined_call_operand.vmem [shape: f32[1,16], index: 5, kind: input, shape index: {}]
  %s6 = inlined_call_operand.vmem [shape: f32[32,128], index: 6, kind: input, shape index: {}]
  %s7 = inlined_call_operand.vmem [shape: f32[1,128], index: 7, kind: input, shape index: {}]
  %s8 = inlined_call_operand.vmem [shape: f32[32,128], index: 8, kind: input, shape index: {}]
  %s9 = inlined_call_operand.vmem [shape: f32[1,128], index: 9, kind: input, shape index: {}]
  %s10 = inlined_call_operand.vmem [shape: f32[16,128], index: 10, kind: input, shape index: {}]
  %s11 = inlined_call_operand.vmem [shape: f32[1,128], index: 11, kind: input, shape index: {}]
  %s12 = inlined_call_operand.vmem [shape: f32[128,4], index: 12, kind: input, shape index: {}]
  %s13 = inlined_call_operand.vmem [shape: f32[200,4], index: 13, kind: output, shape index: {}]
  %s14 = sld [smem:[#allocation0]]
  $region62: #{tpu_custom_call.1} parent=0
    _
  %s16 = ssub.s32 1, %s14
  %s17 = scalar_select 0, %s16, %s14
  // Predicated region
  $region2: #{tpu_custom_call.1} parent=0 // pred_check
    _
  $region3: #{tpu_custom_call.1} parent=0 // pred_check_branch
    %19 = sbr.rel (0) target = $region5
  $region4: #{tpu_custom_call.1} parent=0 // pred_region
    _
  $region5: #{tpu_custom_call.1} parent=0 // pred_fallthru
    _
  // Predicated region
  $region6: #{tpu_custom_call.1} parent=0 // pred_check
    _
  $region7: #{tpu_custom_call.1} parent=0 // pred_check_branch
    %21 = sbr.rel (0) target = $region9
  $region8: #{tpu_custom_call.1} parent=0 // pred_region
    _
  $region9: #{tpu_custom_call.1} parent=0 // pred_fallthru
    _
  // Predicated region
  $region10: #{tpu_custom_call.1} parent=0 // pred_check
    _
  $region11: #{tpu_custom_call.1} parent=0 // pred_check_branch
    %23 = sbr.rel (0) target = $region13
  $region12: #{tpu_custom_call.1} parent=0 // pred_region
    _
  $region13: #{tpu_custom_call.1} parent=0 // pred_fallthru
    _
  // Predicated region
  $region14: #{tpu_custom_call.1} parent=0 // pred_check
    _
  $region15: #{tpu_custom_call.1} parent=0 // pred_check_branch
    %25 = sbr.rel (0) target = $region17
  $region16: #{tpu_custom_call.1} parent=0 // pred_region
    _
  $region17: #{tpu_custom_call.1} parent=0 // pred_fallthru
    _
  // Predicated region
  $region18: #{tpu_custom_call.1} parent=0 // pred_check
    _
  $region19: #{tpu_custom_call.1} parent=0 // pred_check_branch
    %27 = sbr.rel (0) target = $region21
  $region20: #{tpu_custom_call.1} parent=0 // pred_region
    _
  $region21: #{tpu_custom_call.1} parent=0 // pred_fallthru
    _
  // Predicated region
  $region22: #{tpu_custom_call.1} parent=0 // pred_check
    _
  $region23: #{tpu_custom_call.1} parent=0 // pred_check_branch
    %29 = sbr.rel (0) target = $region25
  $region24: #{tpu_custom_call.1} parent=0 // pred_region
    _
  $region25: #{tpu_custom_call.1} parent=0 // pred_fallthru
    _
  // Predicated region
  $region26: #{tpu_custom_call.1} parent=0 // pred_check
    _
  $region27: #{tpu_custom_call.1} parent=0 // pred_check_branch
    %31 = sbr.rel (0) target = $region29
  $region28: #{tpu_custom_call.1} parent=0 // pred_region
    _
  $region29: #{tpu_custom_call.1} parent=0 // pred_fallthru
    _
  // Predicated region
  $region30: #{tpu_custom_call.1} parent=0 // pred_check
    _
  $region31: #{tpu_custom_call.1} parent=0 // pred_check_branch
    %33 = sbr.rel (0) target = $region33
  $region32: #{tpu_custom_call.1} parent=0 // pred_region
    _
  $region33: #{tpu_custom_call.1} parent=0 // pred_fallthru
    _
  // Predicated region
  $region34: #{tpu_custom_call.1} parent=0 // pred_check
    _
  $region35: #{tpu_custom_call.1} parent=0 // pred_check_branch
    %35 = sbr.rel (0) target = $region37
  $region36: #{tpu_custom_call.1} parent=0 // pred_region
    _
  $region37: #{tpu_custom_call.1} parent=0 // pred_fallthru
    _
  // Predicated region
  $region38: #{tpu_custom_call.1} parent=0 // pred_check
    _
  $region39: #{tpu_custom_call.1} parent=0 // pred_check_branch
    %37 = sbr.rel (0) target = $region41
  $region40: #{tpu_custom_call.1} parent=0 // pred_region
    _
  $region41: #{tpu_custom_call.1} parent=0 // pred_fallthru
    _
  // Predicated region
  $region42: #{tpu_custom_call.1} parent=0 // pred_check
    _
  $region43: #{tpu_custom_call.1} parent=0 // pred_check_branch
    %39 = sbr.rel (0) target = $region45
  $region44: #{tpu_custom_call.1} parent=0 // pred_region
    _
  $region45: #{tpu_custom_call.1} parent=0 // pred_fallthru
    _
  // Predicated region
  $region46: #{tpu_custom_call.1} parent=0 // pred_check
    _
  $region47: #{tpu_custom_call.1} parent=0 // pred_check_branch
    %41 = sbr.rel (0) target = $region49
  $region48: #{tpu_custom_call.1} parent=0 // pred_region
    _
  $region49: #{tpu_custom_call.1} parent=0 // pred_fallthru
    _
  // Predicated region
  $region50: #{tpu_custom_call.1} parent=0 // pred_check
    _
  $region51: #{tpu_custom_call.1} parent=0 // pred_check_branch
    %43 = sbr.rel (0) target = $region53
  $region52: #{tpu_custom_call.1} parent=0 // pred_region
    _
  $region53: #{tpu_custom_call.1} parent=0 // pred_fallthru
    _
  %v44 = vld [vmem:[%s0] sm:$0xff]
  %v45 = vld [vmem:[%s0 + $0x8] sm:$0xff]
  %v46 = vld [vmem:[%s0 + $0x10] sm:$0xff]
  %v47 = vld [vmem:[%s0 + $0x18] sm:$0xff]
  %v48 = vld [vmem:[%s0 + $0x20] sm:$0xff]
  %v49 = vld [vmem:[%s0 + $0x28] sm:$0xff]
  %v50 = vld [vmem:[%s0 + $0x30] sm:$0xff]
  %v51 = vld [vmem:[%s0 + $0x38] sm:$0xff]
  %v52 = vld [vmem:[%s0 + $0x40] sm:$0xff]
  %v53 = vld [vmem:[%s0 + $0x48] sm:$0xff]
  %v54 = vld [vmem:[%s0 + $0x50] sm:$0xff]
  %v55 = vld [vmem:[%s0 + $0x58] sm:$0xff]
  %v56 = vld [vmem:[%s0 + $0x60] sm:$0xff]
  %v57 = vld [vmem:[%s0 + $0x68] sm:$0xff]
  %v58 = vld [vmem:[%s0 + $0x70] sm:$0xff]
  %v59 = vld [vmem:[%s0 + $0x78] sm:$0xff]
  %v60 = vld [vmem:[%s0 + $0x80] sm:$0xff]
  %v61 = vld [vmem:[%s0 + $0x88] sm:$0xff]
  %v62 = vld [vmem:[%s0 + $0x90] sm:$0xff]
  %v63 = vld [vmem:[%s0 + $0x98] sm:$0xff]
  %v64 = vld [vmem:[%s0 + $0xa0] sm:$0xff]
  %v65 = vld [vmem:[%s0 + $0xa8] sm:$0xff]
  %v66 = vld [vmem:[%s0 + $0xb0] sm:$0xff]
  %v67 = vld [vmem:[%s0 + $0xb8] sm:$0xff]
  %v68 = vld [vmem:[%s0 + $0xc0] sm:$0xff]
  %v69 = vld [vmem:[%s6] sm:$0xff]
  %v70 = vld [vmem:[%s6 + $0x8] sm:$0xff]
  %v71 = vld [vmem:[%s6 + $0x10] sm:$0xff]
  %v72 = vld [vmem:[%s6 + $0x18] sm:$0xff]
  %v73 = vld [vmem:[%s7] sm:$0x1]
  %v75 = vlaneseq
  %v76 = vshrl.u32 %v75, 7
  %v77 = vsub.s32 0, %v76
  %v78 = vrot.slane %v73, %v77
  %vm80 = vcmask 261120
  %v82 = vsel %vm80, %v44, 0
  %v85 = vsel %vm80, %v45, 0
  %v88 = vsel %vm80, %v46, 0
  %v91 = vsel %vm80, %v47, 0
  %v94 = vsel %vm80, %v48, 0
  %v97 = vsel %vm80, %v49, 0
  %v100 = vsel %vm80, %v50, 0
  %v103 = vsel %vm80, %v51, 0
  %v106 = vsel %vm80, %v52, 0
  %v109 = vsel %vm80, %v53, 0
  %v112 = vsel %vm80, %v54, 0
  %v115 = vsel %vm80, %v55, 0
  %v118 = vsel %vm80, %v56, 0
  %v121 = vsel %vm80, %v57, 0
  %v124 = vsel %vm80, %v58, 0
  %v127 = vsel %vm80, %v59, 0
  %v130 = vsel %vm80, %v60, 0
  %v133 = vsel %vm80, %v61, 0
  %v136 = vsel %vm80, %v62, 0
  %v139 = vsel %vm80, %v63, 0
  %v142 = vsel %vm80, %v64, 0
  %v145 = vsel %vm80, %v65, 0
  %v148 = vsel %vm80, %v66, 0
  %v151 = vsel %vm80, %v67, 0
  %v154 = vsel %vm80, %v68, 0
  %156 = vmatprep.subr.mxu0 0.0
  %157 = vmatpush1.msra.mxu0 0.0
  %158 = vmatprep.subr.mxu0 0.0
  %159 = vmatpush1.msra.mxu0 0.0
  %160 = vmatprep.subr.mxu0 0.0
  %161 = vmatpush1.msra.mxu0 0.0
  %162 = vmatprep.subr.mxu0 0.0
  %163 = vmatpush1.msra.mxu0 0.0
  %164 = vmatprep.subr.mxu0 0.0
  %165 = vmatpush1.msra.mxu0 0.0
  %166 = vmatprep.subr.mxu0 0.0
  %167 = vmatpush1.msra.mxu0 0.0
  %168 = vmatprep.subr.mxu0 0.0
  %169 = vmatpush1.msra.mxu0 0.0
  %170 = vmatprep.subr.mxu0 0.0
  %171 = vmatpush1.msra.mxu0 0.0
  %172 = vmatprep.subr.mxu0 0.0
  %173 = vmatpush1.msra.mxu0 0.0
  %174 = vmatprep.subr.mxu0 0.0
  %175 = vmatpush1.msra.mxu0 0.0
  %176 = vmatprep.subr.mxu0 0.0
  %177 = vmatpush1.msra.mxu0 0.0
  %178 = vmatprep.subr.mxu0 0.0
  %179 = vmatpush1.msra.mxu0 0.0
  %180 = vmatprep.subr.mxu0 0.0
  %181 = vmatpush1.msra.mxu0 %v72
  %182 = vmatprep.subr.mxu0 0.0
  %183 = vmatpush1.msra.mxu0 %v71
  %184 = vmatprep.subr.mxu0 0.0
  %185 = vmatpush1.msra.mxu0 %v70
  %186 = vmatprep.subr.mxu0 0.0
  %187 = vmatpush1.msra.mxu0 %v69
  %188 = vmatprep.subr.mxu0 0.0
  %189 = vmatpush2.msra.mxu0 0.0
  %190 = vmatprep.subr.mxu0 0.0
  %191 = vmatpush2.msra.mxu0 0.0
  %192 = vmatprep.subr.mxu0 0.0
  %193 = vmatpush2.msra.mxu0 0.0
  %194 = vmatprep.subr.mxu0 0.0
  %195 = vmatpush2.msra.mxu0 0.0
  %196 = vmatprep.subr.mxu0 0.0
  %197 = vmatpush2.msra.mxu0 0.0
  %198 = vmatprep.subr.mxu0 0.0
  %199 = vmatpush2.msra.mxu0 0.0
  %200 = vmatprep.subr.mxu0 0.0
  %201 = vmatpush2.msra.mxu0 0.0
  %202 = vmatprep.subr.mxu0 0.0
  %203 = vmatpush2.msra.mxu0 0.0
  %204 = vmatprep.subr.mxu0 0.0
  %205 = vmatpush2.msra.mxu0 0.0
  %206 = vmatprep.subr.mxu0 0.0
  %207 = vmatpush2.msra.mxu0 0.0
  %208 = vmatprep.subr.mxu0 0.0
  %209 = vmatpush2.msra.mxu0 0.0
  %210 = vmatprep.subr.mxu0 0.0
  %211 = vmatpush2.msra.mxu0 0.0
  %212 = vmatprep.subr.mxu0 0.0
  %213 = vmatpush2.msra.mxu0 0.0
  %214 = vmatprep.subr.mxu0 0.0
  %215 = vmatpush2.msra.mxu0 0.0
  %216 = vmatprep.subr.mxu0 0.0
  %217 = vmatpush2.msra.mxu0 0.0
  %218 = vmatprep.subr.mxu0 0.0
  %219 = vmatpush2.msra.mxu0 0.0
  %220 = vmatprep.mubr.f32.mxu0 0.0
  %221 = vmatmul.mubr.f32.gmra.mxu0 %v82
  %v222 = vpop.f32.mrf.mxu0
  %v223 = vadd.f32 %v78, %v222
  %v224 = vpop.f32.mrf.mxu0
  %225 = vmatprep.mubr.f32.mxu0 0.0
  %226 = vmatmul.mubr.f32.gmra.mxu0 %v85
  %v227 = vpop.f32.mrf.mxu0
  %v228 = vadd.f32 %v78, %v227
  %v229 = vpop.f32.mrf.mxu0
  %230 = vmatprep.mubr.f32.mxu0 0.0
  %231 = vmatmul.mubr.f32.gmra.mxu0 %v88
  %v232 = vpop.f32.mrf.mxu0
  %v233 = vadd.f32 %v78, %v232
  %v234 = vpop.f32.mrf.mxu0
  %235 = vmatprep.mubr.f32.mxu0 0.0
  %236 = vmatmul.mubr.f32.gmra.mxu0 %v91
  %v237 = vpop.f32.mrf.mxu0
  %v238 = vadd.f32 %v78, %v237
  %v239 = vpop.f32.mrf.mxu0
  %240 = vmatprep.mubr.f32.mxu0 0.0
  %241 = vmatmul.mubr.f32.gmra.mxu0 %v94
  %v242 = vpop.f32.mrf.mxu0
  %v243 = vadd.f32 %v78, %v242
  %v244 = vpop.f32.mrf.mxu0
  %245 = vmatprep.mubr.f32.mxu0 0.0
  %246 = vmatmul.mubr.f32.gmra.mxu0 %v97
  %v247 = vpop.f32.mrf.mxu0
  %v248 = vadd.f32 %v78, %v247
  %v249 = vpop.f32.mrf.mxu0
  %250 = vmatprep.mubr.f32.mxu0 0.0
  %251 = vmatmul.mubr.f32.gmra.mxu0 %v100
  %v252 = vpop.f32.mrf.mxu0
  %v253 = vadd.f32 %v78, %v252
  %v254 = vpop.f32.mrf.mxu0
  %255 = vmatprep.mubr.f32.mxu0 0.0
  %256 = vmatmul.mubr.f32.gmra.mxu0 %v103
  %v257 = vpop.f32.mrf.mxu0
  %v258 = vadd.f32 %v78, %v257
  %v259 = vpop.f32.mrf.mxu0
  %260 = vmatprep.mubr.f32.mxu0 0.0
  %261 = vmatmul.mubr.f32.gmra.mxu0 %v106
  %v262 = vpop.f32.mrf.mxu0
  %v263 = vadd.f32 %v78, %v262
  %v264 = vpop.f32.mrf.mxu0
  %265 = vmatprep.mubr.f32.mxu0 0.0
  %266 = vmatmul.mubr.f32.gmra.mxu0 %v109
  %v267 = vpop.f32.mrf.mxu0
  %v268 = vadd.f32 %v78, %v267
  %v269 = vpop.f32.mrf.mxu0
  %270 = vmatprep.mubr.f32.mxu0 0.0
  %271 = vmatmul.mubr.f32.gmra.mxu0 %v112
  %v272 = vpop.f32.mrf.mxu0
  %v273 = vadd.f32 %v78, %v272
  %v274 = vpop.f32.mrf.mxu0
  %275 = vmatprep.mubr.f32.mxu0 0.0
  %276 = vmatmul.mubr.f32.gmra.mxu0 %v115
  %v277 = vpop.f32.mrf.mxu0
  %v278 = vadd.f32 %v78, %v277
  %v279 = vpop.f32.mrf.mxu0
  %280 = vmatprep.mubr.f32.mxu0 0.0
  %281 = vmatmul.mubr.f32.gmra.mxu0 %v118
  %v282 = vpop.f32.mrf.mxu0
  %v283 = vadd.f32 %v78, %v282
  %v284 = vpop.f32.mrf.mxu0
  %285 = vmatprep.mubr.f32.mxu0 0.0
  %286 = vmatmul.mubr.f32.gmra.mxu0 %v121
  %v287 = vpop.f32.mrf.mxu0
  %v288 = vadd.f32 %v78, %v287
  %v289 = vpop.f32.mrf.mxu0
  %290 = vmatprep.mubr.f32.mxu0 0.0
  %291 = vmatmul.mubr.f32.gmra.mxu0 %v124
  %v292 = vpop.f32.mrf.mxu0
  %v293 = vadd.f32 %v78, %v292
  %v294 = vpop.f32.mrf.mxu0
  %295 = vmatprep.mubr.f32.mxu0 0.0
  %296 = vmatmul.mubr.f32.gmra.mxu0 %v127
  %v297 = vpop.f32.mrf.mxu0
  %v298 = vadd.f32 %v78, %v297
  %v299 = vpop.f32.mrf.mxu0
  %300 = vmatprep.mubr.f32.mxu0 0.0
  %301 = vmatmul.mubr.f32.gmra.mxu0 %v130
  %v302 = vpop.f32.mrf.mxu0
  %v303 = vadd.f32 %v78, %v302
  %v304 = vpop.f32.mrf.mxu0
  %305 = vmatprep.mubr.f32.mxu0 0.0
  %306 = vmatmul.mubr.f32.gmra.mxu0 %v133
  %v307 = vpop.f32.mrf.mxu0
  %v308 = vadd.f32 %v78, %v307
  %v309 = vpop.f32.mrf.mxu0
  %310 = vmatprep.mubr.f32.mxu0 0.0
  %311 = vmatmul.mubr.f32.gmra.mxu0 %v136
  %v312 = vpop.f32.mrf.mxu0
  %v313 = vadd.f32 %v78, %v312
  %v314 = vpop.f32.mrf.mxu0
  %315 = vmatprep.mubr.f32.mxu0 0.0
  %316 = vmatmul.mubr.f32.gmra.mxu0 %v139
  %v317 = vpop.f32.mrf.mxu0
  %v318 = vadd.f32 %v78, %v317
  %v319 = vpop.f32.mrf.mxu0
  %320 = vmatprep.mubr.f32.mxu0 0.0
  %321 = vmatmul.mubr.f32.gmra.mxu0 %v142
  %v322 = vpop.f32.mrf.mxu0
  %v323 = vadd.f32 %v78, %v322
  %v324 = vpop.f32.mrf.mxu0
  %325 = vmatprep.mubr.f32.mxu0 0.0
  %326 = vmatmul.mubr.f32.gmra.mxu0 %v145
  %v327 = vpop.f32.mrf.mxu0
  %v328 = vadd.f32 %v78, %v327
  %v329 = vpop.f32.mrf.mxu0
  %330 = vmatprep.mubr.f32.mxu0 0.0
  %331 = vmatmul.mubr.f32.gmra.mxu0 %v148
  %v332 = vpop.f32.mrf.mxu0
  %v333 = vadd.f32 %v78, %v332
  %v334 = vpop.f32.mrf.mxu0
  %335 = vmatprep.mubr.f32.mxu0 0.0
  %336 = vmatmul.mubr.f32.gmra.mxu0 %v151
  %v337 = vpop.f32.mrf.mxu0
  %v338 = vadd.f32 %v78, %v337
  %v339 = vpop.f32.mrf.mxu0
  %340 = vmatprep.mubr.f32.mxu0 0.0
  %341 = vmatmul.mubr.f32.gmra.mxu0 %v154
  %v342 = vpop.f32.mrf.mxu0
  %v343 = vadd.f32 %v78, %v342
  %v344 = vpop.f32.mrf.mxu0
  %345 = vdwg.mxu0
  %v346 = vld [vmem:[%s1] sm:$0xff]
  %v347 = vld [vmem:[%s1 + $0x8] sm:$0xff]
  %v348 = vld [vmem:[%s1 + $0x10] sm:$0xff]
  %v349 = vld [vmem:[%s1 + $0x18] sm:$0xff]
  %v350 = vld [vmem:[%s1 + $0x20] sm:$0xff]
  %v351 = vld [vmem:[%s1 + $0x28] sm:$0xff]
  %v352 = vld [vmem:[%s1 + $0x30] sm:$0xff]
  %v353 = vld [vmem:[%s1 + $0x38] sm:$0xff]
  %v354 = vld [vmem:[%s1 + $0x40] sm:$0xff]
  %v355 = vld [vmem:[%s1 + $0x48] sm:$0xff]
  %v356 = vld [vmem:[%s1 + $0x50] sm:$0xff]
  %v357 = vld [vmem:[%s1 + $0x58] sm:$0xff]
  %v358 = vld [vmem:[%s1 + $0x60] sm:$0xff]
  %v359 = vld [vmem:[%s1 + $0x68] sm:$0xff]
  %v360 = vld [vmem:[%s1 + $0x70] sm:$0xff]
  %v361 = vld [vmem:[%s1 + $0x78] sm:$0xff]
  %v362 = vld [vmem:[%s1 + $0x80] sm:$0xff]
  %v363 = vld [vmem:[%s1 + $0x88] sm:$0xff]
  %v364 = vld [vmem:[%s1 + $0x90] sm:$0xff]
  %v365 = vld [vmem:[%s1 + $0x98] sm:$0xff]
  %v366 = vld [vmem:[%s1 + $0xa0] sm:$0xff]
  %v367 = vld [vmem:[%s1 + $0xa8] sm:$0xff]
  %v368 = vld [vmem:[%s1 + $0xb0] sm:$0xff]
  %v369 = vld [vmem:[%s1 + $0xb8] sm:$0xff]
  %v370 = vld [vmem:[%s1 + $0xc0] sm:$0xff]
  %v371 = vld [vmem:[%s8] sm:$0xff]
  %v372 = vld [vmem:[%s8 + $0x8] sm:$0xff]
  %v373 = vld [vmem:[%s8 + $0x10] sm:$0xff]
  %v374 = vld [vmem:[%s8 + $0x18] sm:$0xff]
  %v375 = vld [vmem:[%s9] sm:$0x1]
  %v377 = vlaneseq
  %v378 = vshrl.u32 %v377, 7
  %v379 = vsub.s32 0, %v378
  %v380 = vrot.slane %v375, %v379
  %v383 = vsel %vm80, %v346, 0
  %v386 = vsel %vm80, %v347, 0
  %v389 = vsel %vm80, %v348, 0
  %v392 = vsel %vm80, %v349, 0
  %v395 = vsel %vm80, %v350, 0
  %v398 = vsel %vm80, %v351, 0
  %v401 = vsel %vm80, %v352, 0
  %v404 = vsel %vm80, %v353, 0
  %v407 = vsel %vm80, %v354, 0
  %v410 = vsel %vm80, %v355, 0
  %v413 = vsel %vm80, %v356, 0
  %v416 = vsel %vm80, %v357, 0
  %v419 = vsel %vm80, %v358, 0
  %v422 = vsel %vm80, %v359, 0
  %v425 = vsel %vm80, %v360, 0
  %v428 = vsel %vm80, %v361, 0
  %v431 = vsel %vm80, %v362, 0
  %v434 = vsel %vm80, %v363, 0
  %v437 = vsel %vm80, %v364, 0
  %v440 = vsel %vm80, %v365, 0
  %v443 = vsel %vm80, %v366, 0
  %v446 = vsel %vm80, %v367, 0
  %v449 = vsel %vm80, %v368, 0
  %v452 = vsel %vm80, %v369, 0
  %v455 = vsel %vm80, %v370, 0
  %457 = vmatprep.subr.mxu0 0.0
  %458 = vmatpush1.msra.mxu0 0.0
  %459 = vmatprep.subr.mxu0 0.0
  %460 = vmatpush1.msra.mxu0 0.0
  %461 = vmatprep.subr.mxu0 0.0
  %462 = vmatpush1.msra.mxu0 0.0
  %463 = vmatprep.subr.mxu0 0.0
  %464 = vmatpush1.msra.mxu0 0.0
  %465 = vmatprep.subr.mxu0 0.0
  %466 = vmatpush1.msra.mxu0 0.0
  %467 = vmatprep.subr.mxu0 0.0
  %468 = vmatpush1.msra.mxu0 0.0
  %469 = vmatprep.subr.mxu0 0.0
  %470 = vmatpush1.msra.mxu0 0.0
  %471 = vmatprep.subr.mxu0 0.0
  %472 = vmatpush1.msra.mxu0 0.0
  %473 = vmatprep.subr.mxu0 0.0
  %474 = vmatpush1.msra.mxu0 0.0
  %475 = vmatprep.subr.mxu0 0.0
  %476 = vmatpush1.msra.mxu0 0.0
  %477 = vmatprep.subr.mxu0 0.0
  %478 = vmatpush1.msra.mxu0 0.0
  %479 = vmatprep.subr.mxu0 0.0
  %480 = vmatpush1.msra.mxu0 0.0
  %481 = vmatprep.subr.mxu0 0.0
  %482 = vmatpush1.msra.mxu0 %v374
  %483 = vmatprep.subr.mxu0 0.0
  %484 = vmatpush1.msra.mxu0 %v373
  %485 = vmatprep.subr.mxu0 0.0
  %486 = vmatpush1.msra.mxu0 %v372
  %487 = vmatprep.subr.mxu0 0.0
  %488 = vmatpush1.msra.mxu0 %v371
  %489 = vmatprep.subr.mxu0 0.0
  %490 = vmatpush2.msra.mxu0 0.0
  %491 = vmatprep.subr.mxu0 0.0
  %492 = vmatpush2.msra.mxu0 0.0
  %493 = vmatprep.subr.mxu0 0.0
  %494 = vmatpush2.msra.mxu0 0.0
  %495 = vmatprep.subr.mxu0 0.0
  %496 = vmatpush2.msra.mxu0 0.0
  %497 = vmatprep.subr.mxu0 0.0
  %498 = vmatpush2.msra.mxu0 0.0
  %499 = vmatprep.subr.mxu0 0.0
  %500 = vmatpush2.msra.mxu0 0.0
  %501 = vmatprep.subr.mxu0 0.0
  %502 = vmatpush2.msra.mxu0 0.0
  %503 = vmatprep.subr.mxu0 0.0
  %504 = vmatpush2.msra.mxu0 0.0
  %505 = vmatprep.subr.mxu0 0.0
  %506 = vmatpush2.msra.mxu0 0.0
  %507 = vmatprep.subr.mxu0 0.0
  %508 = vmatpush2.msra.mxu0 0.0
  %509 = vmatprep.subr.mxu0 0.0
  %510 = vmatpush2.msra.mxu0 0.0
  %511 = vmatprep.subr.mxu0 0.0
  %512 = vmatpush2.msra.mxu0 0.0
  %513 = vmatprep.subr.mxu0 0.0
  %514 = vmatpush2.msra.mxu0 0.0
  %515 = vmatprep.subr.mxu0 0.0
  %516 = vmatpush2.msra.mxu0 0.0
  %517 = vmatprep.subr.mxu0 0.0
  %518 = vmatpush2.msra.mxu0 0.0
  %519 = vmatprep.subr.mxu0 0.0
  %520 = vmatpush2.msra.mxu0 0.0
  %521 = vmatprep.mubr.f32.mxu0 0.0
  %522 = vmatmul.mubr.f32.gmra.mxu0 %v383
  %v523 = vpop.f32.mrf.mxu0
  %v524 = vadd.f32 %v380, %v523
  %v525 = vpop.f32.mrf.mxu0
  %526 = vmatprep.mubr.f32.mxu0 0.0
  %527 = vmatmul.mubr.f32.gmra.mxu0 %v386
  %v528 = vpop.f32.mrf.mxu0
  %v529 = vadd.f32 %v380, %v528
  %v530 = vpop.f32.mrf.mxu0
  %531 = vmatprep.mubr.f32.mxu0 0.0
  %532 = vmatmul.mubr.f32.gmra.mxu0 %v389
  %v533 = vpop.f32.mrf.mxu0
  %v534 = vadd.f32 %v380, %v533
  %v535 = vpop.f32.mrf.mxu0
  %536 = vmatprep.mubr.f32.mxu0 0.0
  %537 = vmatmul.mubr.f32.gmra.mxu0 %v392
  %v538 = vpop.f32.mrf.mxu0
  %v539 = vadd.f32 %v380, %v538
  %v540 = vpop.f32.mrf.mxu0
  %541 = vmatprep.mubr.f32.mxu0 0.0
  %542 = vmatmul.mubr.f32.gmra.mxu0 %v395
  %v543 = vpop.f32.mrf.mxu0
  %v544 = vadd.f32 %v380, %v543
  %v545 = vpop.f32.mrf.mxu0
  %546 = vmatprep.mubr.f32.mxu0 0.0
  %547 = vmatmul.mubr.f32.gmra.mxu0 %v398
  %v548 = vpop.f32.mrf.mxu0
  %v549 = vadd.f32 %v380, %v548
  %v550 = vpop.f32.mrf.mxu0
  %551 = vmatprep.mubr.f32.mxu0 0.0
  %552 = vmatmul.mubr.f32.gmra.mxu0 %v401
  %v553 = vpop.f32.mrf.mxu0
  %v554 = vadd.f32 %v380, %v553
  %v555 = vpop.f32.mrf.mxu0
  %556 = vmatprep.mubr.f32.mxu0 0.0
  %557 = vmatmul.mubr.f32.gmra.mxu0 %v404
  %v558 = vpop.f32.mrf.mxu0
  %v559 = vadd.f32 %v380, %v558
  %v560 = vpop.f32.mrf.mxu0
  %561 = vmatprep.mubr.f32.mxu0 0.0
  %562 = vmatmul.mubr.f32.gmra.mxu0 %v407
  %v563 = vpop.f32.mrf.mxu0
  %v564 = vadd.f32 %v380, %v563
  %v565 = vpop.f32.mrf.mxu0
  %566 = vmatprep.mubr.f32.mxu0 0.0
  %567 = vmatmul.mubr.f32.gmra.mxu0 %v410
  %v568 = vpop.f32.mrf.mxu0
  %v569 = vadd.f32 %v380, %v568
  %v570 = vpop.f32.mrf.mxu0
  %571 = vmatprep.mubr.f32.mxu0 0.0
  %572 = vmatmul.mubr.f32.gmra.mxu0 %v413
  %v573 = vpop.f32.mrf.mxu0
  %v574 = vadd.f32 %v380, %v573
  %v575 = vpop.f32.mrf.mxu0
  %576 = vmatprep.mubr.f32.mxu0 0.0
  %577 = vmatmul.mubr.f32.gmra.mxu0 %v416
  %v578 = vpop.f32.mrf.mxu0
  %v579 = vadd.f32 %v380, %v578
  %v580 = vpop.f32.mrf.mxu0
  %581 = vmatprep.mubr.f32.mxu0 0.0
  %582 = vmatmul.mubr.f32.gmra.mxu0 %v419
  %v583 = vpop.f32.mrf.mxu0
  %v584 = vadd.f32 %v380, %v583
  %v585 = vpop.f32.mrf.mxu0
  %586 = vmatprep.mubr.f32.mxu0 0.0
  %587 = vmatmul.mubr.f32.gmra.mxu0 %v422
  %v588 = vpop.f32.mrf.mxu0
  %v589 = vadd.f32 %v380, %v588
  %v590 = vpop.f32.mrf.mxu0
  %591 = vmatprep.mubr.f32.mxu0 0.0
  %592 = vmatmul.mubr.f32.gmra.mxu0 %v425
  %v593 = vpop.f32.mrf.mxu0
  %v594 = vadd.f32 %v380, %v593
  %v595 = vpop.f32.mrf.mxu0
  %596 = vmatprep.mubr.f32.mxu0 0.0
  %597 = vmatmul.mubr.f32.gmra.mxu0 %v428
  %v598 = vpop.f32.mrf.mxu0
  %v599 = vadd.f32 %v380, %v598
  %v600 = vpop.f32.mrf.mxu0
  %601 = vmatprep.mubr.f32.mxu0 0.0
  %602 = vmatmul.mubr.f32.gmra.mxu0 %v431
  %v603 = vpop.f32.mrf.mxu0
  %v604 = vadd.f32 %v380, %v603
  %v605 = vpop.f32.mrf.mxu0
  %606 = vmatprep.mubr.f32.mxu0 0.0
  %607 = vmatmul.mubr.f32.gmra.mxu0 %v434
  %v608 = vpop.f32.mrf.mxu0
  %v609 = vadd.f32 %v380, %v608
  %v610 = vpop.f32.mrf.mxu0
  %611 = vmatprep.mubr.f32.mxu0 0.0
  %612 = vmatmul.mubr.f32.gmra.mxu0 %v437
  %v613 = vpop.f32.mrf.mxu0
  %v614 = vadd.f32 %v380, %v613
  %v615 = vpop.f32.mrf.mxu0
  %616 = vmatprep.mubr.f32.mxu0 0.0
  %617 = vmatmul.mubr.f32.gmra.mxu0 %v440
  %v618 = vpop.f32.mrf.mxu0
  %v619 = vadd.f32 %v380, %v618
  %v620 = vpop.f32.mrf.mxu0
  %621 = vmatprep.mubr.f32.mxu0 0.0
  %622 = vmatmul.mubr.f32.gmra.mxu0 %v443
  %v623 = vpop.f32.mrf.mxu0
  %v624 = vadd.f32 %v380, %v623
  %v625 = vpop.f32.mrf.mxu0
  %626 = vmatprep.mubr.f32.mxu0 0.0
  %627 = vmatmul.mubr.f32.gmra.mxu0 %v446
  %v628 = vpop.f32.mrf.mxu0
  %v629 = vadd.f32 %v380, %v628
  %v630 = vpop.f32.mrf.mxu0
  %631 = vmatprep.mubr.f32.mxu0 0.0
  %632 = vmatmul.mubr.f32.gmra.mxu0 %v449
  %v633 = vpop.f32.mrf.mxu0
  %v634 = vadd.f32 %v380, %v633
  %v635 = vpop.f32.mrf.mxu0
  %636 = vmatprep.mubr.f32.mxu0 0.0
  %637 = vmatmul.mubr.f32.gmra.mxu0 %v452
  %v638 = vpop.f32.mrf.mxu0
  %v639 = vadd.f32 %v380, %v638
  %v640 = vpop.f32.mrf.mxu0
  %641 = vmatprep.mubr.f32.mxu0 0.0
  %642 = vmatmul.mubr.f32.gmra.mxu0 %v455
  %v643 = vpop.f32.mrf.mxu0
  %v644 = vadd.f32 %v380, %v643
  %v645 = vpop.f32.mrf.mxu0
  %646 = vdwg.mxu0
  %v647 = vld [vmem:[%s2] sm:$0xff]
  %v648 = vld [vmem:[%s2 + $0x8] sm:$0xff]
  %v649 = vld [vmem:[%s2 + $0x10] sm:$0xff]
  %v650 = vld [vmem:[%s2 + $0x18] sm:$0xff]
  %v651 = vld [vmem:[%s2 + $0x20] sm:$0xff]
  %v652 = vld [vmem:[%s2 + $0x28] sm:$0xff]
  %v653 = vld [vmem:[%s2 + $0x30] sm:$0xff]
  %v654 = vld [vmem:[%s2 + $0x38] sm:$0xff]
  %v655 = vld [vmem:[%s2 + $0x40] sm:$0xff]
  %v656 = vld [vmem:[%s2 + $0x48] sm:$0xff]
  %v657 = vld [vmem:[%s2 + $0x50] sm:$0xff]
  %v658 = vld [vmem:[%s2 + $0x58] sm:$0xff]
  %v659 = vld [vmem:[%s2 + $0x60] sm:$0xff]
  %v660 = vld [vmem:[%s2 + $0x68] sm:$0xff]
  %v661 = vld [vmem:[%s2 + $0x70] sm:$0xff]
  %v662 = vld [vmem:[%s2 + $0x78] sm:$0xff]
  %v663 = vld [vmem:[%s2 + $0x80] sm:$0xff]
  %v664 = vld [vmem:[%s2 + $0x88] sm:$0xff]
  %v665 = vld [vmem:[%s2 + $0x90] sm:$0xff]
  %v666 = vld [vmem:[%s2 + $0x98] sm:$0xff]
  %v667 = vld [vmem:[%s2 + $0xa0] sm:$0xff]
  %v668 = vld [vmem:[%s2 + $0xa8] sm:$0xff]
  %v669 = vld [vmem:[%s2 + $0xb0] sm:$0xff]
  %v670 = vld [vmem:[%s2 + $0xb8] sm:$0xff]
  %v671 = vld [vmem:[%s2 + $0xc0] sm:$0xff]
  %v672 = vld [vmem:[%s5] sm:$0x1]
  %v673 = vsub.f32 0.0, %v672
  %v674 = vsub.f32 0.0, %v647
  %v675 = vsub.f32 0.0, %v648
  %v676 = vsub.f32 0.0, %v649
  %v677 = vsub.f32 0.0, %v650
  %v678 = vsub.f32 0.0, %v651
  %v679 = vsub.f32 0.0, %v652
  %v680 = vsub.f32 0.0, %v653
  %v681 = vsub.f32 0.0, %v654
  %v682 = vsub.f32 0.0, %v655
  %v683 = vsub.f32 0.0, %v656
  %v684 = vsub.f32 0.0, %v657
  %v685 = vsub.f32 0.0, %v658
  %v686 = vsub.f32 0.0, %v659
  %v687 = vsub.f32 0.0, %v660
  %v688 = vsub.f32 0.0, %v661
  %v689 = vsub.f32 0.0, %v662
  %v690 = vsub.f32 0.0, %v663
  %v691 = vsub.f32 0.0, %v664
  %v692 = vsub.f32 0.0, %v665
  %v693 = vsub.f32 0.0, %v666
  %v694 = vsub.f32 0.0, %v667
  %v695 = vsub.f32 0.0, %v668
  %v696 = vsub.f32 0.0, %v669
  %v697 = vsub.f32 0.0, %v670
  %v698 = vsub.f32 0.0, %v671
  %v699 = vmul.f32 %v674, 1.442695
  %v700 = vpow.pop %v699
  %v701 = vmul.f32 %v675, 1.442695
  %v702 = vpow.pop %v701
  %v703 = vmul.f32 %v676, 1.442695
  %v704 = vpow.pop %v703
  %v705 = vmul.f32 %v677, 1.442695
  %v706 = vpow.pop %v705
  %v707 = vmul.f32 %v678, 1.442695
  %v708 = vpow.pop %v707
  %v709 = vmul.f32 %v679, 1.442695
  %v710 = vpow.pop %v709
  %v711 = vmul.f32 %v680, 1.442695
  %v712 = vpow.pop %v711
  %v713 = vmul.f32 %v681, 1.442695
  %v714 = vpow.pop %v713
  %v715 = vmul.f32 %v682, 1.442695
  %v716 = vpow.pop %v715
  %v717 = vmul.f32 %v683, 1.442695
  %v718 = vpow.pop %v717
  %v719 = vmul.f32 %v684, 1.442695
  %v720 = vpow.pop %v719
  %v721 = vmul.f32 %v685, 1.442695
  %v722 = vpow.pop %v721
  %v723 = vmul.f32 %v686, 1.442695
  %v724 = vpow.pop %v723
  %v725 = vmul.f32 %v687, 1.442695
  %v726 = vpow.pop %v725
  %v727 = vmul.f32 %v688, 1.442695
  %v728 = vpow.pop %v727
  %v729 = vmul.f32 %v689, 1.442695
  %v730 = vpow.pop %v729
  %v731 = vmul.f32 %v690, 1.442695
  %v732 = vpow.pop %v731
  %v733 = vmul.f32 %v691, 1.442695
  %v734 = vpow.pop %v733
  %v735 = vmul.f32 %v692, 1.442695
  %v736 = vpow.pop %v735
  %v737 = vmul.f32 %v693, 1.442695
  %v738 = vpow.pop %v737
  %v739 = vmul.f32 %v694, 1.442695
  %v740 = vpow.pop %v739
  %v741 = vmul.f32 %v695, 1.442695
  %v742 = vpow.pop %v741
  %v743 = vmul.f32 %v696, 1.442695
  %v744 = vpow.pop %v743
  %v745 = vmul.f32 %v697, 1.442695
  %v746 = vpow.pop %v745
  %v747 = vmul.f32 %v698, 1.442695
  %v748 = vpow.pop %v747
  %v749 = vld [vmem:[%s4] sm:$0x1]
  %751 = vset.pattern.permute.xlu0 0
  %752 = vperm.xlu0 %751, %v700
  %v753 = vpop.permute.xlu0 %752
  %756 = vset.pattern.permute.xlu0 0
  %757 = vperm.xlu0 %756, %v702
  %v758 = vpop.permute.xlu0 %757
  %761 = vset.pattern.permute.xlu0 0
  %762 = vperm.xlu0 %761, %v704
  %v763 = vpop.permute.xlu0 %762
  %766 = vset.pattern.permute.xlu0 0
  %767 = vperm.xlu0 %766, %v706
  %v768 = vpop.permute.xlu0 %767
  %771 = vset.pattern.permute.xlu0 0
  %772 = vperm.xlu0 %771, %v708
  %v773 = vpop.permute.xlu0 %772
  %776 = vset.pattern.permute.xlu0 0
  %777 = vperm.xlu0 %776, %v710
  %v778 = vpop.permute.xlu0 %777
  %781 = vset.pattern.permute.xlu0 0
  %782 = vperm.xlu0 %781, %v712
  %v783 = vpop.permute.xlu0 %782
  %786 = vset.pattern.permute.xlu0 0
  %787 = vperm.xlu0 %786, %v714
  %v788 = vpop.permute.xlu0 %787
  %791 = vset.pattern.permute.xlu0 0
  %792 = vperm.xlu0 %791, %v716
  %v793 = vpop.permute.xlu0 %792
  %796 = vset.pattern.permute.xlu0 0
  %797 = vperm.xlu0 %796, %v718
  %v798 = vpop.permute.xlu0 %797
  %801 = vset.pattern.permute.xlu0 0
  %802 = vperm.xlu0 %801, %v720
  %v803 = vpop.permute.xlu0 %802
  %806 = vset.pattern.permute.xlu0 0
  %807 = vperm.xlu0 %806, %v722
  %v808 = vpop.permute.xlu0 %807
  %811 = vset.pattern.permute.xlu0 0
  %812 = vperm.xlu0 %811, %v724
  %v813 = vpop.permute.xlu0 %812
  %816 = vset.pattern.permute.xlu0 0
  %817 = vperm.xlu0 %816, %v726
  %v818 = vpop.permute.xlu0 %817
  %821 = vset.pattern.permute.xlu0 0
  %822 = vperm.xlu0 %821, %v728
  %v823 = vpop.permute.xlu0 %822
  %826 = vset.pattern.permute.xlu0 0
  %827 = vperm.xlu0 %826, %v730
  %v828 = vpop.permute.xlu0 %827
  %831 = vset.pattern.permute.xlu0 0
  %832 = vperm.xlu0 %831, %v732
  %v833 = vpop.permute.xlu0 %832
  %836 = vset.pattern.permute.xlu0 0
  %837 = vperm.xlu0 %836, %v734
  %v838 = vpop.permute.xlu0 %837
  %841 = vset.pattern.permute.xlu0 0
  %842 = vperm.xlu0 %841, %v736
  %v843 = vpop.permute.xlu0 %842
  %846 = vset.pattern.permute.xlu0 0
  %847 = vperm.xlu0 %846, %v738
  %v848 = vpop.permute.xlu0 %847
  %851 = vset.pattern.permute.xlu0 0
  %852 = vperm.xlu0 %851, %v740
  %v853 = vpop.permute.xlu0 %852
  %856 = vset.pattern.permute.xlu0 0
  %857 = vperm.xlu0 %856, %v742
  %v858 = vpop.permute.xlu0 %857
  %861 = vset.pattern.permute.xlu0 0
  %862 = vperm.xlu0 %861, %v744
  %v863 = vpop.permute.xlu0 %862
  %866 = vset.pattern.permute.xlu0 0
  %867 = vperm.xlu0 %866, %v746
  %v868 = vpop.permute.xlu0 %867
  %871 = vset.pattern.permute.xlu0 0
  %872 = vperm.xlu0 %871, %v748
  %v873 = vpop.permute.xlu0 %872
  %v876 = vlaneseq
  %v877 = vshrl.u32 %v876, 7
  %v878 = vsub.s32 0, %v877
  %v879 = vrot.slane %v749, %v878
  %v881 = vsub.f32 %v753, %v879
  %v882 = vsub.f32 %v758, %v879
  %v883 = vsub.f32 %v763, %v879
  %v884 = vsub.f32 %v768, %v879
  %v885 = vsub.f32 %v773, %v879
  %v886 = vsub.f32 %v778, %v879
  %v887 = vsub.f32 %v783, %v879
  %v888 = vsub.f32 %v788, %v879
  %v889 = vsub.f32 %v793, %v879
  %v890 = vsub.f32 %v798, %v879
  %v891 = vsub.f32 %v803, %v879
  %v892 = vsub.f32 %v808, %v879
  %v893 = vsub.f32 %v813, %v879
  %v894 = vsub.f32 %v818, %v879
  %v895 = vsub.f32 %v823, %v879
  %v896 = vsub.f32 %v828, %v879
  %v897 = vsub.f32 %v833, %v879
  %v898 = vsub.f32 %v838, %v879
  %v899 = vsub.f32 %v843, %v879
  %v900 = vsub.f32 %v848, %v879
  %v901 = vsub.f32 %v853, %v879
  %v902 = vsub.f32 %v858, %v879
  %v903 = vsub.f32 %v863, %v879
  %v904 = vsub.f32 %v868, %v879
  %v905 = vsub.f32 %v873, %v879
  %v906 = vmul.f32 %v881, %v881
  %v907 = vmul.f32 %v882, %v882
  %v908 = vmul.f32 %v883, %v883
  %v909 = vmul.f32 %v884, %v884
  %v910 = vmul.f32 %v885, %v885
  %v911 = vmul.f32 %v886, %v886
  %v912 = vmul.f32 %v887, %v887
  %v913 = vmul.f32 %v888, %v888
  %v914 = vmul.f32 %v889, %v889
  %v915 = vmul.f32 %v890, %v890
  %v916 = vmul.f32 %v891, %v891
  %v917 = vmul.f32 %v892, %v892
  %v918 = vmul.f32 %v893, %v893
  %v919 = vmul.f32 %v894, %v894
  %v920 = vmul.f32 %v895, %v895
  %v921 = vmul.f32 %v896, %v896
  %v922 = vmul.f32 %v897, %v897
  %v923 = vmul.f32 %v898, %v898
  %v924 = vmul.f32 %v899, %v899
  %v925 = vmul.f32 %v900, %v900
  %v926 = vmul.f32 %v901, %v901
  %v927 = vmul.f32 %v902, %v902
  %v928 = vmul.f32 %v903, %v903
  %v929 = vmul.f32 %v904, %v904
  %v930 = vmul.f32 %v905, %v905
  %v932 = vlaneseq
  %v933 = vshrl.u32 %v932, 7
  %v934 = vsub.s32 0, %v933
  %v935 = vrot.slane %v673, %v934
  %v937 = vmul.f32 %v935, %v906
  %v938 = vmul.f32 %v935, %v907
  %v939 = vmul.f32 %v935, %v908
  %v940 = vmul.f32 %v935, %v909
  %v941 = vmul.f32 %v935, %v910
  %v942 = vmul.f32 %v935, %v911
  %v943 = vmul.f32 %v935, %v912
  %v944 = vmul.f32 %v935, %v913
  %v945 = vmul.f32 %v935, %v914
  %v946 = vmul.f32 %v935, %v915
  %v947 = vmul.f32 %v935, %v916
  %v948 = vmul.f32 %v935, %v917
  %v949 = vmul.f32 %v935, %v918
  %v950 = vmul.f32 %v935, %v919
  %v951 = vmul.f32 %v935, %v920
  %v952 = vmul.f32 %v935, %v921
  %v953 = vmul.f32 %v935, %v922
  %v954 = vmul.f32 %v935, %v923
  %v955 = vmul.f32 %v935, %v924
  %v956 = vmul.f32 %v935, %v925
  %v957 = vmul.f32 %v935, %v926
  %v958 = vmul.f32 %v935, %v927
  %v959 = vmul.f32 %v935, %v928
  %v960 = vmul.f32 %v935, %v929
  %v961 = vmul.f32 %v935, %v930
  %v962 = vmul.f32 %v937, 1.442695
  %v963 = vpow.pop %v962
  %v964 = vmul.f32 %v938, 1.442695
  %v965 = vpow.pop %v964
  %v966 = vmul.f32 %v939, 1.442695
  %v967 = vpow.pop %v966
  %v968 = vmul.f32 %v940, 1.442695
  %v969 = vpow.pop %v968
  %v970 = vmul.f32 %v941, 1.442695
  %v971 = vpow.pop %v970
  %v972 = vmul.f32 %v942, 1.442695
  %v973 = vpow.pop %v972
  %v974 = vmul.f32 %v943, 1.442695
  %v975 = vpow.pop %v974
  %v976 = vmul.f32 %v944, 1.442695
  %v977 = vpow.pop %v976
  %v978 = vmul.f32 %v945, 1.442695
  %v979 = vpow.pop %v978
  %v980 = vmul.f32 %v946, 1.442695
  %v981 = vpow.pop %v980
  %v982 = vmul.f32 %v947, 1.442695
  %v983 = vpow.pop %v982
  %v984 = vmul.f32 %v948, 1.442695
  %v985 = vpow.pop %v984
  %v986 = vmul.f32 %v949, 1.442695
  %v987 = vpow.pop %v986
  %v988 = vmul.f32 %v950, 1.442695
  %v989 = vpow.pop %v988
  %v990 = vmul.f32 %v951, 1.442695
  %v991 = vpow.pop %v990
  %v992 = vmul.f32 %v952, 1.442695
  %v993 = vpow.pop %v992
  %v994 = vmul.f32 %v953, 1.442695
  %v995 = vpow.pop %v994
  %v996 = vmul.f32 %v954, 1.442695
  %v997 = vpow.pop %v996
  %v998 = vmul.f32 %v955, 1.442695
  %v999 = vpow.pop %v998
  %v1000 = vmul.f32 %v956, 1.442695
  %v1001 = vpow.pop %v1000
  %v1002 = vmul.f32 %v957, 1.442695
  %v1003 = vpow.pop %v1002
  %v1004 = vmul.f32 %v958, 1.442695
  %v1005 = vpow.pop %v1004
  %v1006 = vmul.f32 %v959, 1.442695
  %v1007 = vpow.pop %v1006
  %v1008 = vmul.f32 %v960, 1.442695
  %v1009 = vpow.pop %v1008
  %v1010 = vmul.f32 %v961, 1.442695
  %v1011 = vpow.pop %v1010
  %v1012 = vld [vmem:[%s3] sm:$0xff]
  %v1013 = vld [vmem:[%s3 + $0x8] sm:$0xff]
  %v1014 = vld [vmem:[%s3 + $0x10] sm:$0xff]
  %v1015 = vld [vmem:[%s3 + $0x18] sm:$0xff]
  %v1016 = vld [vmem:[%s3 + $0x20] sm:$0xff]
  %v1017 = vld [vmem:[%s3 + $0x28] sm:$0xff]
  %v1018 = vld [vmem:[%s3 + $0x30] sm:$0xff]
  %v1019 = vld [vmem:[%s3 + $0x38] sm:$0xff]
  %v1020 = vld [vmem:[%s3 + $0x40] sm:$0xff]
  %v1021 = vld [vmem:[%s3 + $0x48] sm:$0xff]
  %v1022 = vld [vmem:[%s3 + $0x50] sm:$0xff]
  %v1023 = vld [vmem:[%s3 + $0x58] sm:$0xff]
  %v1024 = vld [vmem:[%s3 + $0x60] sm:$0xff]
  %v1025 = vld [vmem:[%s3 + $0x68] sm:$0xff]
  %v1026 = vld [vmem:[%s3 + $0x70] sm:$0xff]
  %v1027 = vld [vmem:[%s3 + $0x78] sm:$0xff]
  %v1028 = vld [vmem:[%s3 + $0x80] sm:$0xff]
  %v1029 = vld [vmem:[%s3 + $0x88] sm:$0xff]
  %v1030 = vld [vmem:[%s3 + $0x90] sm:$0xff]
  %v1031 = vld [vmem:[%s3 + $0x98] sm:$0xff]
  %v1032 = vld [vmem:[%s3 + $0xa0] sm:$0xff]
  %v1033 = vld [vmem:[%s3 + $0xa8] sm:$0xff]
  %v1034 = vld [vmem:[%s3 + $0xb0] sm:$0xff]
  %v1035 = vld [vmem:[%s3 + $0xb8] sm:$0xff]
  %v1036 = vld [vmem:[%s3 + $0xc0] sm:$0xff]
  %1038 = vset.pattern.permute.xlu0 0
  %1039 = vperm.xlu0 %1038, %v1012
  %v1040 = vpop.permute.xlu0 %1039
  %1043 = vset.pattern.permute.xlu0 0
  %1044 = vperm.xlu0 %1043, %v1013
  %v1045 = vpop.permute.xlu0 %1044
  %1048 = vset.pattern.permute.xlu0 0
  %1049 = vperm.xlu0 %1048, %v1014
  %v1050 = vpop.permute.xlu0 %1049
  %1053 = vset.pattern.permute.xlu0 0
  %1054 = vperm.xlu0 %1053, %v1015
  %v1055 = vpop.permute.xlu0 %1054
  %1058 = vset.pattern.permute.xlu0 0
  %1059 = vperm.xlu0 %1058, %v1016
  %v1060 = vpop.permute.xlu0 %1059
  %1063 = vset.pattern.permute.xlu0 0
  %1064 = vperm.xlu0 %1063, %v1017
  %v1065 = vpop.permute.xlu0 %1064
  %1068 = vset.pattern.permute.xlu0 0
  %1069 = vperm.xlu0 %1068, %v1018
  %v1070 = vpop.permute.xlu0 %1069
  %1073 = vset.pattern.permute.xlu0 0
  %1074 = vperm.xlu0 %1073, %v1019
  %v1075 = vpop.permute.xlu0 %1074
  %1078 = vset.pattern.permute.xlu0 0
  %1079 = vperm.xlu0 %1078, %v1020
  %v1080 = vpop.permute.xlu0 %1079
  %1083 = vset.pattern.permute.xlu0 0
  %1084 = vperm.xlu0 %1083, %v1021
  %v1085 = vpop.permute.xlu0 %1084
  %1088 = vset.pattern.permute.xlu0 0
  %1089 = vperm.xlu0 %1088, %v1022
  %v1090 = vpop.permute.xlu0 %1089
  %1093 = vset.pattern.permute.xlu0 0
  %1094 = vperm.xlu0 %1093, %v1023
  %v1095 = vpop.permute.xlu0 %1094
  %1098 = vset.pattern.permute.xlu0 0
  %1099 = vperm.xlu0 %1098, %v1024
  %v1100 = vpop.permute.xlu0 %1099
  %1103 = vset.pattern.permute.xlu0 0
  %1104 = vperm.xlu0 %1103, %v1025
  %v1105 = vpop.permute.xlu0 %1104
  %1108 = vset.pattern.permute.xlu0 0
  %1109 = vperm.xlu0 %1108, %v1026
  %v1110 = vpop.permute.xlu0 %1109
  %1113 = vset.pattern.permute.xlu0 0
  %1114 = vperm.xlu0 %1113, %v1027
  %v1115 = vpop.permute.xlu0 %1114
  %1118 = vset.pattern.permute.xlu0 0
  %1119 = vperm.xlu0 %1118, %v1028
  %v1120 = vpop.permute.xlu0 %1119
  %1123 = vset.pattern.permute.xlu0 0
  %1124 = vperm.xlu0 %1123, %v1029
  %v1125 = vpop.permute.xlu0 %1124
  %1128 = vset.pattern.permute.xlu0 0
  %1129 = vperm.xlu0 %1128, %v1030
  %v1130 = vpop.permute.xlu0 %1129
  %1133 = vset.pattern.permute.xlu0 0
  %1134 = vperm.xlu0 %1133, %v1031
  %v1135 = vpop.permute.xlu0 %1134
  %1138 = vset.pattern.permute.xlu0 0
  %1139 = vperm.xlu0 %1138, %v1032
  %v1140 = vpop.permute.xlu0 %1139
  %1143 = vset.pattern.permute.xlu0 0
  %1144 = vperm.xlu0 %1143, %v1033
  %v1145 = vpop.permute.xlu0 %1144
  %1148 = vset.pattern.permute.xlu0 0
  %1149 = vperm.xlu0 %1148, %v1034
  %v1150 = vpop.permute.xlu0 %1149
  %1153 = vset.pattern.permute.xlu0 0
  %1154 = vperm.xlu0 %1153, %v1035
  %v1155 = vpop.permute.xlu0 %1154
  %1158 = vset.pattern.permute.xlu0 0
  %1159 = vperm.xlu0 %1158, %v1036
  %v1160 = vpop.permute.xlu0 %1159
  %v1162 = vmul.f32 %v963, %v1040
  %v1163 = vmul.f32 %v965, %v1045
  %v1164 = vmul.f32 %v967, %v1050
  %v1165 = vmul.f32 %v969, %v1055
  %v1166 = vmul.f32 %v971, %v1060
  %v1167 = vmul.f32 %v973, %v1065
  %v1168 = vmul.f32 %v975, %v1070
  %v1169 = vmul.f32 %v977, %v1075
  %v1170 = vmul.f32 %v979, %v1080
  %v1171 = vmul.f32 %v981, %v1085
  %v1172 = vmul.f32 %v983, %v1090
  %v1173 = vmul.f32 %v985, %v1095
  %v1174 = vmul.f32 %v987, %v1100
  %v1175 = vmul.f32 %v989, %v1105
  %v1176 = vmul.f32 %v991, %v1110
  %v1177 = vmul.f32 %v993, %v1115
  %v1178 = vmul.f32 %v995, %v1120
  %v1179 = vmul.f32 %v997, %v1125
  %v1180 = vmul.f32 %v999, %v1130
  %v1181 = vmul.f32 %v1001, %v1135
  %v1182 = vmul.f32 %v1003, %v1140
  %v1183 = vmul.f32 %v1005, %v1145
  %v1184 = vmul.f32 %v1007, %v1150
  %v1185 = vmul.f32 %v1009, %v1155
  %v1186 = vmul.f32 %v1011, %v1160
  %v1187 = vld [vmem:[%s10] sm:$0xff]
  %v1188 = vld [vmem:[%s10 + $0x8] sm:$0xff]
  %v1189 = vld [vmem:[%s11] sm:$0x1]
  %v1191 = vlaneseq
  %v1192 = vshrl.u32 %v1191, 7
  %v1193 = vsub.s32 0, %v1192
  %v1194 = vrot.slane %v1189, %v1193
  %vm1196 = vcmask 130048
  %v1198 = vsel %vm1196, %v1162, 0
  %v1201 = vsel %vm1196, %v1163, 0
  %v1204 = vsel %vm1196, %v1164, 0
  %v1207 = vsel %vm1196, %v1165, 0
  %v1210 = vsel %vm1196, %v1166, 0
  %v1213 = vsel %vm1196, %v1167, 0
  %v1216 = vsel %vm1196, %v1168, 0
  %v1219 = vsel %vm1196, %v1169, 0
  %v1222 = vsel %vm1196, %v1170, 0
  %v1225 = vsel %vm1196, %v1171, 0
  %v1228 = vsel %vm1196, %v1172, 0
  %v1231 = vsel %vm1196, %v1173, 0
  %v1234 = vsel %vm1196, %v1174, 0
  %v1237 = vsel %vm1196, %v1175, 0
  %v1240 = vsel %vm1196, %v1176, 0
  %v1243 = vsel %vm1196, %v1177, 0
  %v1246 = vsel %vm1196, %v1178, 0
  %v1249 = vsel %vm1196, %v1179, 0
  %v1252 = vsel %vm1196, %v1180, 0
  %v1255 = vsel %vm1196, %v1181, 0
  %v1258 = vsel %vm1196, %v1182, 0
  %v1261 = vsel %vm1196, %v1183, 0
  %v1264 = vsel %vm1196, %v1184, 0
  %v1267 = vsel %vm1196, %v1185, 0
  %v1270 = vsel %vm1196, %v1186, 0
  %1272 = vmatprep.subr.mxu0 0.0
  %1273 = vmatpush1.msra.mxu0 0.0
  %1274 = vmatprep.subr.mxu0 0.0
  %1275 = vmatpush1.msra.mxu0 0.0
  %1276 = vmatprep.subr.mxu0 0.0
  %1277 = vmatpush1.msra.mxu0 0.0
  %1278 = vmatprep.subr.mxu0 0.0
  %1279 = vmatpush1.msra.mxu0 0.0
  %1280 = vmatprep.subr.mxu0 0.0
  %1281 = vmatpush1.msra.mxu0 0.0
  %1282 = vmatprep.subr.mxu0 0.0
  %1283 = vmatpush1.msra.mxu0 0.0
  %1284 = vmatprep.subr.mxu0 0.0
  %1285 = vmatpush1.msra.mxu0 0.0
  %1286 = vmatprep.subr.mxu0 0.0
  %1287 = vmatpush1.msra.mxu0 0.0
  %1288 = vmatprep.subr.mxu0 0.0
  %1289 = vmatpush1.msra.mxu0 0.0
  %1290 = vmatprep.subr.mxu0 0.0
  %1291 = vmatpush1.msra.mxu0 0.0
  %1292 = vmatprep.subr.mxu0 0.0
  %1293 = vmatpush1.msra.mxu0 0.0
  %1294 = vmatprep.subr.mxu0 0.0
  %1295 = vmatpush1.msra.mxu0 0.0
  %1296 = vmatprep.subr.mxu0 0.0
  %1297 = vmatpush1.msra.mxu0 0.0
  %1298 = vmatprep.subr.mxu0 0.0
  %1299 = vmatpush1.msra.mxu0 0.0
  %1300 = vmatprep.subr.mxu0 0.0
  %1301 = vmatpush1.msra.mxu0 %v1188
  %1302 = vmatprep.subr.mxu0 0.0
  %1303 = vmatpush1.msra.mxu0 %v1187
  %1304 = vmatprep.subr.mxu0 0.0
  %1305 = vmatpush2.msra.mxu0 0.0
  %1306 = vmatprep.subr.mxu0 0.0
  %1307 = vmatpush2.msra.mxu0 0.0
  %1308 = vmatprep.subr.mxu0 0.0
  %1309 = vmatpush2.msra.mxu0 0.0
  %1310 = vmatprep.subr.mxu0 0.0
  %1311 = vmatpush2.msra.mxu0 0.0
  %1312 = vmatprep.subr.mxu0 0.0
  %1313 = vmatpush2.msra.mxu0 0.0
  %1314 = vmatprep.subr.mxu0 0.0
  %1315 = vmatpush2.msra.mxu0 0.0
  %1316 = vmatprep.subr.mxu0 0.0
  %1317 = vmatpush2.msra.mxu0 0.0
  %1318 = vmatprep.subr.mxu0 0.0
  %1319 = vmatpush2.msra.mxu0 0.0
  %1320 = vmatprep.subr.mxu0 0.0
  %1321 = vmatpush2.msra.mxu0 0.0
  %1322 = vmatprep.subr.mxu0 0.0
  %1323 = vmatpush2.msra.mxu0 0.0
  %1324 = vmatprep.subr.mxu0 0.0
  %1325 = vmatpush2.msra.mxu0 0.0
  %1326 = vmatprep.subr.mxu0 0.0
  %1327 = vmatpush2.msra.mxu0 0.0
  %1328 = vmatprep.subr.mxu0 0.0
  %1329 = vmatpush2.msra.mxu0 0.0
  %1330 = vmatprep.subr.mxu0 0.0
  %1331 = vmatpush2.msra.mxu0 0.0
  %1332 = vmatprep.subr.mxu0 0.0
  %1333 = vmatpush2.msra.mxu0 0.0
  %1334 = vmatprep.subr.mxu0 0.0
  %1335 = vmatpush2.msra.mxu0 0.0
  %1336 = vmatprep.mubr.f32.mxu0 0.0
  %1337 = vmatmul.mubr.f32.gmra.mxu0 %v1198
  %v1338 = vpop.f32.mrf.mxu0
  %v1339 = vadd.f32 %v1194, %v1338
  %v1340 = vpop.f32.mrf.mxu0
  %1341 = vmatprep.mubr.f32.mxu0 0.0
  %1342 = vmatmul.mubr.f32.gmra.mxu0 %v1201
  %v1343 = vpop.f32.mrf.mxu0
  %v1344 = vadd.f32 %v1194, %v1343
  %v1345 = vpop.f32.mrf.mxu0
  %1346 = vmatprep.mubr.f32.mxu0 0.0
  %1347 = vmatmul.mubr.f32.gmra.mxu0 %v1204
  %v1348 = vpop.f32.mrf.mxu0
  %v1349 = vadd.f32 %v1194, %v1348
  %v1350 = vpop.f32.mrf.mxu0
  %1351 = vmatprep.mubr.f32.mxu0 0.0
  %1352 = vmatmul.mubr.f32.gmra.mxu0 %v1207
  %v1353 = vpop.f32.mrf.mxu0
  %v1354 = vadd.f32 %v1194, %v1353
  %v1355 = vpop.f32.mrf.mxu0
  %1356 = vmatprep.mubr.f32.mxu0 0.0
  %1357 = vmatmul.mubr.f32.gmra.mxu0 %v1210
  %v1358 = vpop.f32.mrf.mxu0
  %v1359 = vadd.f32 %v1194, %v1358
  %v1360 = vpop.f32.mrf.mxu0
  %1361 = vmatprep.mubr.f32.mxu0 0.0
  %1362 = vmatmul.mubr.f32.gmra.mxu0 %v1213
  %v1363 = vpop.f32.mrf.mxu0
  %v1364 = vadd.f32 %v1194, %v1363
  %v1365 = vpop.f32.mrf.mxu0
  %1366 = vmatprep.mubr.f32.mxu0 0.0
  %1367 = vmatmul.mubr.f32.gmra.mxu0 %v1216
  %v1368 = vpop.f32.mrf.mxu0
  %v1369 = vadd.f32 %v1194, %v1368
  %v1370 = vpop.f32.mrf.mxu0
  %1371 = vmatprep.mubr.f32.mxu0 0.0
  %1372 = vmatmul.mubr.f32.gmra.mxu0 %v1219
  %v1373 = vpop.f32.mrf.mxu0
  %v1374 = vadd.f32 %v1194, %v1373
  %v1375 = vpop.f32.mrf.mxu0
  %1376 = vmatprep.mubr.f32.mxu0 0.0
  %1377 = vmatmul.mubr.f32.gmra.mxu0 %v1222
  %v1378 = vpop.f32.mrf.mxu0
  %v1379 = vadd.f32 %v1194, %v1378
  %v1380 = vpop.f32.mrf.mxu0
  %1381 = vmatprep.mubr.f32.mxu0 0.0
  %1382 = vmatmul.mubr.f32.gmra.mxu0 %v1225
  %v1383 = vpop.f32.mrf.mxu0
  %v1384 = vadd.f32 %v1194, %v1383
  %v1385 = vpop.f32.mrf.mxu0
  %1386 = vmatprep.mubr.f32.mxu0 0.0
  %1387 = vmatmul.mubr.f32.gmra.mxu0 %v1228
  %v1388 = vpop.f32.mrf.mxu0
  %v1389 = vadd.f32 %v1194, %v1388
  %v1390 = vpop.f32.mrf.mxu0
  %1391 = vmatprep.mubr.f32.mxu0 0.0
  %1392 = vmatmul.mubr.f32.gmra.mxu0 %v1231
  %v1393 = vpop.f32.mrf.mxu0
  %v1394 = vadd.f32 %v1194, %v1393
  %v1395 = vpop.f32.mrf.mxu0
  %1396 = vmatprep.mubr.f32.mxu0 0.0
  %1397 = vmatmul.mubr.f32.gmra.mxu0 %v1234
  %v1398 = vpop.f32.mrf.mxu0
  %v1399 = vadd.f32 %v1194, %v1398
  %v1400 = vpop.f32.mrf.mxu0
  %1401 = vmatprep.mubr.f32.mxu0 0.0
  %1402 = vmatmul.mubr.f32.gmra.mxu0 %v1237
  %v1403 = vpop.f32.mrf.mxu0
  %v1404 = vadd.f32 %v1194, %v1403
  %v1405 = vpop.f32.mrf.mxu0
  %1406 = vmatprep.mubr.f32.mxu0 0.0
  %1407 = vmatmul.mubr.f32.gmra.mxu0 %v1240
  %v1408 = vpop.f32.mrf.mxu0
  %v1409 = vadd.f32 %v1194, %v1408
  %v1410 = vpop.f32.mrf.mxu0
  %1411 = vmatprep.mubr.f32.mxu0 0.0
  %1412 = vmatmul.mubr.f32.gmra.mxu0 %v1243
  %v1413 = vpop.f32.mrf.mxu0
  %v1414 = vadd.f32 %v1194, %v1413
  %v1415 = vpop.f32.mrf.mxu0
  %1416 = vmatprep.mubr.f32.mxu0 0.0
  %1417 = vmatmul.mubr.f32.gmra.mxu0 %v1246
  %v1418 = vpop.f32.mrf.mxu0
  %v1419 = vadd.f32 %v1194, %v1418
  %v1420 = vpop.f32.mrf.mxu0
  %1421 = vmatprep.mubr.f32.mxu0 0.0
  %1422 = vmatmul.mubr.f32.gmra.mxu0 %v1249
  %v1423 = vpop.f32.mrf.mxu0
  %v1424 = vadd.f32 %v1194, %v1423
  %v1425 = vpop.f32.mrf.mxu0
  %1426 = vmatprep.mubr.f32.mxu0 0.0
  %1427 = vmatmul.mubr.f32.gmra.mxu0 %v1252
  %v1428 = vpop.f32.mrf.mxu0
  %v1429 = vadd.f32 %v1194, %v1428
  %v1430 = vpop.f32.mrf.mxu0
  %1431 = vmatprep.mubr.f32.mxu0 0.0
  %1432 = vmatmul.mubr.f32.gmra.mxu0 %v1255
  %v1433 = vpop.f32.mrf.mxu0
  %v1434 = vadd.f32 %v1194, %v1433
  %v1435 = vpop.f32.mrf.mxu0
  %1436 = vmatprep.mubr.f32.mxu0 0.0
  %1437 = vmatmul.mubr.f32.gmra.mxu0 %v1258
  %v1438 = vpop.f32.mrf.mxu0
  %v1439 = vadd.f32 %v1194, %v1438
  %v1440 = vpop.f32.mrf.mxu0
  %1441 = vmatprep.mubr.f32.mxu0 0.0
  %1442 = vmatmul.mubr.f32.gmra.mxu0 %v1261
  %v1443 = vpop.f32.mrf.mxu0
  %v1444 = vadd.f32 %v1194, %v1443
  %v1445 = vpop.f32.mrf.mxu0
  %1446 = vmatprep.mubr.f32.mxu0 0.0
  %1447 = vmatmul.mubr.f32.gmra.mxu0 %v1264
  %v1448 = vpop.f32.mrf.mxu0
  %v1449 = vadd.f32 %v1194, %v1448
  %v1450 = vpop.f32.mrf.mxu0
  %1451 = vmatprep.mubr.f32.mxu0 0.0
  %1452 = vmatmul.mubr.f32.gmra.mxu0 %v1267
  %v1453 = vpop.f32.mrf.mxu0
  %v1454 = vadd.f32 %v1194, %v1453
  %v1455 = vpop.f32.mrf.mxu0
  %1456 = vmatprep.mubr.f32.mxu0 0.0
  %1457 = vmatmul.mubr.f32.gmra.mxu0 %v1270
  %v1458 = vpop.f32.mrf.mxu0
  %v1459 = vadd.f32 %v1194, %v1458
  %v1460 = vpop.f32.mrf.mxu0
  %1461 = vdwg.mxu0
  %v1462 = vsub.f32 0.0, %v1339
  %v1463 = vsub.f32 0.0, %v1344
  %v1464 = vsub.f32 0.0, %v1349
  %v1465 = vsub.f32 0.0, %v1354
  %v1466 = vsub.f32 0.0, %v1359
  %v1467 = vsub.f32 0.0, %v1364
  %v1468 = vsub.f32 0.0, %v1369
  %v1469 = vsub.f32 0.0, %v1374
  %v1470 = vsub.f32 0.0, %v1379
  %v1471 = vsub.f32 0.0, %v1384
  %v1472 = vsub.f32 0.0, %v1389
  %v1473 = vsub.f32 0.0, %v1394
  %v1474 = vsub.f32 0.0, %v1399
  %v1475 = vsub.f32 0.0, %v1404
  %v1476 = vsub.f32 0.0, %v1409
  %v1477 = vsub.f32 0.0, %v1414
  %v1478 = vsub.f32 0.0, %v1419
  %v1479 = vsub.f32 0.0, %v1424
  %v1480 = vsub.f32 0.0, %v1429
  %v1481 = vsub.f32 0.0, %v1434
  %v1482 = vsub.f32 0.0, %v1439
  %v1483 = vsub.f32 0.0, %v1444
  %v1484 = vsub.f32 0.0, %v1449
  %v1485 = vsub.f32 0.0, %v1454
  %v1486 = vsub.f32 0.0, %v1459
  %v1487 = vmul.f32 %v1462, 1.442695
  %v1488 = vpow.pop %v1487
  %v1489 = vmul.f32 %v1463, 1.442695
  %v1490 = vpow.pop %v1489
  %v1491 = vmul.f32 %v1464, 1.442695
  %v1492 = vpow.pop %v1491
  %v1493 = vmul.f32 %v1465, 1.442695
  %v1494 = vpow.pop %v1493
  %v1495 = vmul.f32 %v1466, 1.442695
  %v1496 = vpow.pop %v1495
  %v1497 = vmul.f32 %v1467, 1.442695
  %v1498 = vpow.pop %v1497
  %v1499 = vmul.f32 %v1468, 1.442695
  %v1500 = vpow.pop %v1499
  %v1501 = vmul.f32 %v1469, 1.442695
  %v1502 = vpow.pop %v1501
  %v1503 = vmul.f32 %v1470, 1.442695
  %v1504 = vpow.pop %v1503
  %v1505 = vmul.f32 %v1471, 1.442695
  %v1506 = vpow.pop %v1505
  %v1507 = vmul.f32 %v1472, 1.442695
  %v1508 = vpow.pop %v1507
  %v1509 = vmul.f32 %v1473, 1.442695
  %v1510 = vpow.pop %v1509
  %v1511 = vmul.f32 %v1474, 1.442695
  %v1512 = vpow.pop %v1511
  %v1513 = vmul.f32 %v1475, 1.442695
  %v1514 = vpow.pop %v1513
  %v1515 = vmul.f32 %v1476, 1.442695
  %v1516 = vpow.pop %v1515
  %v1517 = vmul.f32 %v1477, 1.442695
  %v1518 = vpow.pop %v1517
  %v1519 = vmul.f32 %v1478, 1.442695
  %v1520 = vpow.pop %v1519
  %v1521 = vmul.f32 %v1479, 1.442695
  %v1522 = vpow.pop %v1521
  %v1523 = vmul.f32 %v1480, 1.442695
  %v1524 = vpow.pop %v1523
  %v1525 = vmul.f32 %v1481, 1.442695
  %v1526 = vpow.pop %v1525
  %v1527 = vmul.f32 %v1482, 1.442695
  %v1528 = vpow.pop %v1527
  %v1529 = vmul.f32 %v1483, 1.442695
  %v1530 = vpow.pop %v1529
  %v1531 = vmul.f32 %v1484, 1.442695
  %v1532 = vpow.pop %v1531
  %v1533 = vmul.f32 %v1485, 1.442695
  %v1534 = vpow.pop %v1533
  %v1535 = vmul.f32 %v1486, 1.442695
  %v1536 = vpow.pop %v1535
  %v1537 = vadd.f32 %v1488, 1.0
  %v1538 = vadd.f32 %v1490, 1.0
  %v1539 = vadd.f32 %v1492, 1.0
  %v1540 = vadd.f32 %v1494, 1.0
  %v1541 = vadd.f32 %v1496, 1.0
  %v1542 = vadd.f32 %v1498, 1.0
  %v1543 = vadd.f32 %v1500, 1.0
  %v1544 = vadd.f32 %v1502, 1.0
  %v1545 = vadd.f32 %v1504, 1.0
  %v1546 = vadd.f32 %v1506, 1.0
  %v1547 = vadd.f32 %v1508, 1.0
  %v1548 = vadd.f32 %v1510, 1.0
  %v1549 = vadd.f32 %v1512, 1.0
  %v1550 = vadd.f32 %v1514, 1.0
  %v1551 = vadd.f32 %v1516, 1.0
  %v1552 = vadd.f32 %v1518, 1.0
  %v1553 = vadd.f32 %v1520, 1.0
  %v1554 = vadd.f32 %v1522, 1.0
  %v1555 = vadd.f32 %v1524, 1.0
  %v1556 = vadd.f32 %v1526, 1.0
  %v1557 = vadd.f32 %v1528, 1.0
  %v1558 = vadd.f32 %v1530, 1.0
  %v1559 = vadd.f32 %v1532, 1.0
  %v1560 = vadd.f32 %v1534, 1.0
  %v1561 = vadd.f32 %v1536, 1.0
  %v1562 = vrcp.pop %v1537
  %v1563 = vmul.f32 1.0, %v1562
  %v1564 = vrcp.pop %v1538
  %v1565 = vmul.f32 1.0, %v1564
  %v1566 = vrcp.pop %v1539
  %v1567 = vmul.f32 1.0, %v1566
  %v1568 = vrcp.pop %v1540
  %v1569 = vmul.f32 1.0, %v1568
  %v1570 = vrcp.pop %v1541
  %v1571 = vmul.f32 1.0, %v1570
  %v1572 = vrcp.pop %v1542
  %v1573 = vmul.f32 1.0, %v1572
  %v1574 = vrcp.pop %v1543
  %v1575 = vmul.f32 1.0, %v1574
  %v1576 = vrcp.pop %v1544
  %v1577 = vmul.f32 1.0, %v1576
  %v1578 = vrcp.pop %v1545
  %v1579 = vmul.f32 1.0, %v1578
  %v1580 = vrcp.pop %v1546
  %v1581 = vmul.f32 1.0, %v1580
  %v1582 = vrcp.pop %v1547
  %v1583 = vmul.f32 1.0, %v1582
  %v1584 = vrcp.pop %v1548
  %v1585 = vmul.f32 1.0, %v1584
  %v1586 = vrcp.pop %v1549
  %v1587 = vmul.f32 1.0, %v1586
  %v1588 = vrcp.pop %v1550
  %v1589 = vmul.f32 1.0, %v1588
  %v1590 = vrcp.pop %v1551
  %v1591 = vmul.f32 1.0, %v1590
  %v1592 = vrcp.pop %v1552
  %v1593 = vmul.f32 1.0, %v1592
  %v1594 = vrcp.pop %v1553
  %v1595 = vmul.f32 1.0, %v1594
  %v1596 = vrcp.pop %v1554
  %v1597 = vmul.f32 1.0, %v1596
  %v1598 = vrcp.pop %v1555
  %v1599 = vmul.f32 1.0, %v1598
  %v1600 = vrcp.pop %v1556
  %v1601 = vmul.f32 1.0, %v1600
  %v1602 = vrcp.pop %v1557
  %v1603 = vmul.f32 1.0, %v1602
  %v1604 = vrcp.pop %v1558
  %v1605 = vmul.f32 1.0, %v1604
  %v1606 = vrcp.pop %v1559
  %v1607 = vmul.f32 1.0, %v1606
  %v1608 = vrcp.pop %v1560
  %v1609 = vmul.f32 1.0, %v1608
  %v1610 = vrcp.pop %v1561
  %v1611 = vmul.f32 1.0, %v1610
  %v1612 = vmul.f32 %v1339, %v1563
  %v1613 = vmul.f32 %v1344, %v1565
  %v1614 = vmul.f32 %v1349, %v1567
  %v1615 = vmul.f32 %v1354, %v1569
  %v1616 = vmul.f32 %v1359, %v1571
  %v1617 = vmul.f32 %v1364, %v1573
  %v1618 = vmul.f32 %v1369, %v1575
  %v1619 = vmul.f32 %v1374, %v1577
  %v1620 = vmul.f32 %v1379, %v1579
  %v1621 = vmul.f32 %v1384, %v1581
  %v1622 = vmul.f32 %v1389, %v1583
  %v1623 = vmul.f32 %v1394, %v1585
  %v1624 = vmul.f32 %v1399, %v1587
  %v1625 = vmul.f32 %v1404, %v1589
  %v1626 = vmul.f32 %v1409, %v1591
  %v1627 = vmul.f32 %v1414, %v1593
  %v1628 = vmul.f32 %v1419, %v1595
  %v1629 = vmul.f32 %v1424, %v1597
  %v1630 = vmul.f32 %v1429, %v1599
  %v1631 = vmul.f32 %v1434, %v1601
  %v1632 = vmul.f32 %v1439, %v1603
  %v1633 = vmul.f32 %v1444, %v1605
  %v1634 = vmul.f32 %v1449, %v1607
  %v1635 = vmul.f32 %v1454, %v1609
  %v1636 = vmul.f32 %v1459, %v1611
  %v1637 = vmul.f32 %v223, %v524
  %v1638 = vmul.f32 %v228, %v529
  %v1639 = vmul.f32 %v233, %v534
  %v1640 = vmul.f32 %v238, %v539
  %v1641 = vmul.f32 %v243, %v544
  %v1642 = vmul.f32 %v248, %v549
  %v1643 = vmul.f32 %v253, %v554
  %v1644 = vmul.f32 %v258, %v559
  %v1645 = vmul.f32 %v263, %v564
  %v1646 = vmul.f32 %v268, %v569
  %v1647 = vmul.f32 %v273, %v574
  %v1648 = vmul.f32 %v278, %v579
  %v1649 = vmul.f32 %v283, %v584
  %v1650 = vmul.f32 %v288, %v589
  %v1651 = vmul.f32 %v293, %v594
  %v1652 = vmul.f32 %v298, %v599
  %v1653 = vmul.f32 %v303, %v604
  %v1654 = vmul.f32 %v308, %v609
  %v1655 = vmul.f32 %v313, %v614
  %v1656 = vmul.f32 %v318, %v619
  %v1657 = vmul.f32 %v323, %v624
  %v1658 = vmul.f32 %v328, %v629
  %v1659 = vmul.f32 %v333, %v634
  %v1660 = vmul.f32 %v338, %v639
  %v1661 = vmul.f32 %v343, %v644
  %v1662 = vmul.f32 %v1637, %v1612
  %v1663 = vmul.f32 %v1638, %v1613
  %v1664 = vmul.f32 %v1639, %v1614
  %v1665 = vmul.f32 %v1640, %v1615
  %v1666 = vmul.f32 %v1641, %v1616
  %v1667 = vmul.f32 %v1642, %v1617
  %v1668 = vmul.f32 %v1643, %v1618
  %v1669 = vmul.f32 %v1644, %v1619
  %v1670 = vmul.f32 %v1645, %v1620
  %v1671 = vmul.f32 %v1646, %v1621
  %v1672 = vmul.f32 %v1647, %v1622
  %v1673 = vmul.f32 %v1648, %v1623
  %v1674 = vmul.f32 %v1649, %v1624
  %v1675 = vmul.f32 %v1650, %v1625
  %v1676 = vmul.f32 %v1651, %v1626
  %v1677 = vmul.f32 %v1652, %v1627
  %v1678 = vmul.f32 %v1653, %v1628
  %v1679 = vmul.f32 %v1654, %v1629
  %v1680 = vmul.f32 %v1655, %v1630
  %v1681 = vmul.f32 %v1656, %v1631
  %v1682 = vmul.f32 %v1657, %v1632
  %v1683 = vmul.f32 %v1658, %v1633
  %v1684 = vmul.f32 %v1659, %v1634
  %v1685 = vmul.f32 %v1660, %v1635
  %v1686 = vmul.f32 %v1661, %v1636
  %v1687 = vld [vmem:[%s12] sm:$0xff]
  %v1688 = vld [vmem:[%s12 + $0x8] sm:$0xff]
  %v1689 = vld [vmem:[%s12 + $0x10] sm:$0xff]
  %v1690 = vld [vmem:[%s12 + $0x18] sm:$0xff]
  %v1691 = vld [vmem:[%s12 + $0x20] sm:$0xff]
  %v1692 = vld [vmem:[%s12 + $0x28] sm:$0xff]
  %v1693 = vld [vmem:[%s12 + $0x30] sm:$0xff]
  %v1694 = vld [vmem:[%s12 + $0x38] sm:$0xff]
  %v1695 = vld [vmem:[%s12 + $0x40] sm:$0xff]
  %v1696 = vld [vmem:[%s12 + $0x48] sm:$0xff]
  %v1697 = vld [vmem:[%s12 + $0x50] sm:$0xff]
  %v1698 = vld [vmem:[%s12 + $0x58] sm:$0xff]
  %v1699 = vld [vmem:[%s12 + $0x60] sm:$0xff]
  %v1700 = vld [vmem:[%s12 + $0x68] sm:$0xff]
  %v1701 = vld [vmem:[%s12 + $0x70] sm:$0xff]
  %v1702 = vld [vmem:[%s12 + $0x78] sm:$0xff]
  %1703 = vmatprep.subr.mxu0 0.0
  %1704 = vmatpush1.msra.mxu0 %v1702
  %1705 = vmatprep.subr.mxu0 0.0
  %1706 = vmatpush1.msra.mxu0 %v1701
  %1707 = vmatprep.subr.mxu0 0.0
  %1708 = vmatpush1.msra.mxu0 %v1700
  %1709 = vmatprep.subr.mxu0 0.0
  %1710 = vmatpush1.msra.mxu0 %v1699
  %1711 = vmatprep.subr.mxu0 0.0
  %1712 = vmatpush1.msra.mxu0 %v1698
  %1713 = vmatprep.subr.mxu0 0.0
  %1714 = vmatpush1.msra.mxu0 %v1697
  %1715 = vmatprep.subr.mxu0 0.0
  %1716 = vmatpush1.msra.mxu0 %v1696
  %1717 = vmatprep.subr.mxu0 0.0
  %1718 = vmatpush1.msra.mxu0 %v1695
  %1719 = vmatprep.subr.mxu0 0.0
  %1720 = vmatpush1.msra.mxu0 %v1694
  %1721 = vmatprep.subr.mxu0 0.0
  %1722 = vmatpush1.msra.mxu0 %v1693
  %1723 = vmatprep.subr.mxu0 0.0
  %1724 = vmatpush1.msra.mxu0 %v1692
  %1725 = vmatprep.subr.mxu0 0.0
  %1726 = vmatpush1.msra.mxu0 %v1691
  %1727 = vmatprep.subr.mxu0 0.0
  %1728 = vmatpush1.msra.mxu0 %v1690
  %1729 = vmatprep.subr.mxu0 0.0
  %1730 = vmatpush1.msra.mxu0 %v1689
  %1731 = vmatprep.subr.mxu0 0.0
  %1732 = vmatpush1.msra.mxu0 %v1688
  %1733 = vmatprep.subr.mxu0 0.0
  %1734 = vmatpush1.msra.mxu0 %v1687
  %1735 = vmatprep.subr.mxu0 0.0
  %1736 = vmatpush2.msra.mxu0 0.0
  %1737 = vmatprep.subr.mxu0 0.0
  %1738 = vmatpush2.msra.mxu0 0.0
  %1739 = vmatprep.subr.mxu0 0.0
  %1740 = vmatpush2.msra.mxu0 0.0
  %1741 = vmatprep.subr.mxu0 0.0
  %1742 = vmatpush2.msra.mxu0 0.0
  %1743 = vmatprep.subr.mxu0 0.0
  %1744 = vmatpush2.msra.mxu0 0.0
  %1745 = vmatprep.subr.mxu0 0.0
  %1746 = vmatpush2.msra.mxu0 0.0
  %1747 = vmatprep.subr.mxu0 0.0
  %1748 = vmatpush2.msra.mxu0 0.0
  %1749 = vmatprep.subr.mxu0 0.0
  %1750 = vmatpush2.msra.mxu0 0.0
  %1751 = vmatprep.subr.mxu0 0.0
  %1752 = vmatpush2.msra.mxu0 0.0
  %1753 = vmatprep.subr.mxu0 0.0
  %1754 = vmatpush2.msra.mxu0 0.0
  %1755 = vmatprep.subr.mxu0 0.0
  %1756 = vmatpush2.msra.mxu0 0.0
  %1757 = vmatprep.subr.mxu0 0.0
  %1758 = vmatpush2.msra.mxu0 0.0
  %1759 = vmatprep.subr.mxu0 0.0
  %1760 = vmatpush2.msra.mxu0 0.0
  %1761 = vmatprep.subr.mxu0 0.0
  %1762 = vmatpush2.msra.mxu0 0.0
  %1763 = vmatprep.subr.mxu0 0.0
  %1764 = vmatpush2.msra.mxu0 0.0
  %1765 = vmatprep.subr.mxu0 0.0
  %1766 = vmatpush2.msra.mxu0 0.0
  %1767 = vmatprep.mubr.f32.mxu0 0.0
  %1768 = vmatmul.mubr.f32.gmra.mxu0 %v1662
  %v1769 = vpop.f32.mrf.mxu0
  %v1770 = vadd.f32 0.0, %v1769
  %v1771 = vpop.f32.mrf.mxu0
  %1772 = vmatprep.mubr.f32.mxu0 0.0
  %1773 = vmatmul.mubr.f32.gmra.mxu0 %v1663
  %v1774 = vpop.f32.mrf.mxu0
  %v1775 = vadd.f32 0.0, %v1774
  %v1776 = vpop.f32.mrf.mxu0
  %1777 = vmatprep.mubr.f32.mxu0 0.0
  %1778 = vmatmul.mubr.f32.gmra.mxu0 %v1664
  %v1779 = vpop.f32.mrf.mxu0
  %v1780 = vadd.f32 0.0, %v1779
  %v1781 = vpop.f32.mrf.mxu0
  %1782 = vmatprep.mubr.f32.mxu0 0.0
  %1783 = vmatmul.mubr.f32.gmra.mxu0 %v1665
  %v1784 = vpop.f32.mrf.mxu0
  %v1785 = vadd.f32 0.0, %v1784
  %v1786 = vpop.f32.mrf.mxu0
  %1787 = vmatprep.mubr.f32.mxu0 0.0
  %1788 = vmatmul.mubr.f32.gmra.mxu0 %v1666
  %v1789 = vpop.f32.mrf.mxu0
  %v1790 = vadd.f32 0.0, %v1789
  %v1791 = vpop.f32.mrf.mxu0
  %1792 = vmatprep.mubr.f32.mxu0 0.0
  %1793 = vmatmul.mubr.f32.gmra.mxu0 %v1667
  %v1794 = vpop.f32.mrf.mxu0
  %v1795 = vadd.f32 0.0, %v1794
  %v1796 = vpop.f32.mrf.mxu0
  %1797 = vmatprep.mubr.f32.mxu0 0.0
  %1798 = vmatmul.mubr.f32.gmra.mxu0 %v1668
  %v1799 = vpop.f32.mrf.mxu0
  %v1800 = vadd.f32 0.0, %v1799
  %v1801 = vpop.f32.mrf.mxu0
  %1802 = vmatprep.mubr.f32.mxu0 0.0
  %1803 = vmatmul.mubr.f32.gmra.mxu0 %v1669
  %v1804 = vpop.f32.mrf.mxu0
  %v1805 = vadd.f32 0.0, %v1804
  %v1806 = vpop.f32.mrf.mxu0
  %1807 = vmatprep.mubr.f32.mxu0 0.0
  %1808 = vmatmul.mubr.f32.gmra.mxu0 %v1670
  %v1809 = vpop.f32.mrf.mxu0
  %v1810 = vadd.f32 0.0, %v1809
  %v1811 = vpop.f32.mrf.mxu0
  %1812 = vmatprep.mubr.f32.mxu0 0.0
  %1813 = vmatmul.mubr.f32.gmra.mxu0 %v1671
  %v1814 = vpop.f32.mrf.mxu0
  %v1815 = vadd.f32 0.0, %v1814
  %v1816 = vpop.f32.mrf.mxu0
  %1817 = vmatprep.mubr.f32.mxu0 0.0
  %1818 = vmatmul.mubr.f32.gmra.mxu0 %v1672
  %v1819 = vpop.f32.mrf.mxu0
  %v1820 = vadd.f32 0.0, %v1819
  %v1821 = vpop.f32.mrf.mxu0
  %1822 = vmatprep.mubr.f32.mxu0 0.0
  %1823 = vmatmul.mubr.f32.gmra.mxu0 %v1673
  %v1824 = vpop.f32.mrf.mxu0
  %v1825 = vadd.f32 0.0, %v1824
  %v1826 = vpop.f32.mrf.mxu0
  %1827 = vmatprep.mubr.f32.mxu0 0.0
  %1828 = vmatmul.mubr.f32.gmra.mxu0 %v1674
  %v1829 = vpop.f32.mrf.mxu0
  %v1830 = vadd.f32 0.0, %v1829
  %v1831 = vpop.f32.mrf.mxu0
  %1832 = vmatprep.mubr.f32.mxu0 0.0
  %1833 = vmatmul.mubr.f32.gmra.mxu0 %v1675
  %v1834 = vpop.f32.mrf.mxu0
  %v1835 = vadd.f32 0.0, %v1834
  %v1836 = vpop.f32.mrf.mxu0
  %1837 = vmatprep.mubr.f32.mxu0 0.0
  %1838 = vmatmul.mubr.f32.gmra.mxu0 %v1676
  %v1839 = vpop.f32.mrf.mxu0
  %v1840 = vadd.f32 0.0, %v1839
  %v1841 = vpop.f32.mrf.mxu0
  %1842 = vmatprep.mubr.f32.mxu0 0.0
  %1843 = vmatmul.mubr.f32.gmra.mxu0 %v1677
  %v1844 = vpop.f32.mrf.mxu0
  %v1845 = vadd.f32 0.0, %v1844
  %v1846 = vpop.f32.mrf.mxu0
  %1847 = vmatprep.mubr.f32.mxu0 0.0
  %1848 = vmatmul.mubr.f32.gmra.mxu0 %v1678
  %v1849 = vpop.f32.mrf.mxu0
  %v1850 = vadd.f32 0.0, %v1849
  %v1851 = vpop.f32.mrf.mxu0
  %1852 = vmatprep.mubr.f32.mxu0 0.0
  %1853 = vmatmul.mubr.f32.gmra.mxu0 %v1679
  %v1854 = vpop.f32.mrf.mxu0
  %v1855 = vadd.f32 0.0, %v1854
  %v1856 = vpop.f32.mrf.mxu0
  %1857 = vmatprep.mubr.f32.mxu0 0.0
  %1858 = vmatmul.mubr.f32.gmra.mxu0 %v1680
  %v1859 = vpop.f32.mrf.mxu0
  %v1860 = vadd.f32 0.0, %v1859
  %v1861 = vpop.f32.mrf.mxu0
  %1862 = vmatprep.mubr.f32.mxu0 0.0
  %1863 = vmatmul.mubr.f32.gmra.mxu0 %v1681
  %v1864 = vpop.f32.mrf.mxu0
  %v1865 = vadd.f32 0.0, %v1864
  %v1866 = vpop.f32.mrf.mxu0
  %1867 = vmatprep.mubr.f32.mxu0 0.0
  %1868 = vmatmul.mubr.f32.gmra.mxu0 %v1682
  %v1869 = vpop.f32.mrf.mxu0
  %v1870 = vadd.f32 0.0, %v1869
  %v1871 = vpop.f32.mrf.mxu0
  %1872 = vmatprep.mubr.f32.mxu0 0.0
  %1873 = vmatmul.mubr.f32.gmra.mxu0 %v1683
  %v1874 = vpop.f32.mrf.mxu0
  %v1875 = vadd.f32 0.0, %v1874
  %v1876 = vpop.f32.mrf.mxu0
  %1877 = vmatprep.mubr.f32.mxu0 0.0
  %1878 = vmatmul.mubr.f32.gmra.mxu0 %v1684
  %v1879 = vpop.f32.mrf.mxu0
  %v1880 = vadd.f32 0.0, %v1879
  %v1881 = vpop.f32.mrf.mxu0
  %1882 = vmatprep.mubr.f32.mxu0 0.0
  %1883 = vmatmul.mubr.f32.gmra.mxu0 %v1685
  %v1884 = vpop.f32.mrf.mxu0
  %v1885 = vadd.f32 0.0, %v1884
  %v1886 = vpop.f32.mrf.mxu0
  %1887 = vmatprep.mubr.f32.mxu0 0.0
  %1888 = vmatmul.mubr.f32.gmra.mxu0 %v1686
  %v1889 = vpop.f32.mrf.mxu0
  %v1890 = vadd.f32 0.0, %v1889
  %v1891 = vpop.f32.mrf.mxu0
  %1892 = vdwg.mxu0
  %v1893 = vsub.f32 0.0, %v1770
  %v1894 = vsub.f32 0.0, %v1775
  %v1895 = vsub.f32 0.0, %v1780
  %v1896 = vsub.f32 0.0, %v1785
  %v1897 = vsub.f32 0.0, %v1790
  %v1898 = vsub.f32 0.0, %v1795
  %v1899 = vsub.f32 0.0, %v1800
  %v1900 = vsub.f32 0.0, %v1805
  %v1901 = vsub.f32 0.0, %v1810
  %v1902 = vsub.f32 0.0, %v1815
  %v1903 = vsub.f32 0.0, %v1820
  %v1904 = vsub.f32 0.0, %v1825
  %v1905 = vsub.f32 0.0, %v1830
  %v1906 = vsub.f32 0.0, %v1835
  %v1907 = vsub.f32 0.0, %v1840
  %v1908 = vsub.f32 0.0, %v1845
  %v1909 = vsub.f32 0.0, %v1850
  %v1910 = vsub.f32 0.0, %v1855
  %v1911 = vsub.f32 0.0, %v1860
  %v1912 = vsub.f32 0.0, %v1865
  %v1913 = vsub.f32 0.0, %v1870
  %v1914 = vsub.f32 0.0, %v1875
  %v1915 = vsub.f32 0.0, %v1880
  %v1916 = vsub.f32 0.0, %v1885
  %v1917 = vsub.f32 0.0, %v1890
  %v1918 = vmul.f32 %v1893, 1.442695
  %v1919 = vpow.pop %v1918
  %v1920 = vmul.f32 %v1894, 1.442695
  %v1921 = vpow.pop %v1920
  %v1922 = vmul.f32 %v1895, 1.442695
  %v1923 = vpow.pop %v1922
  %v1924 = vmul.f32 %v1896, 1.442695
  %v1925 = vpow.pop %v1924
  %v1926 = vmul.f32 %v1897, 1.442695
  %v1927 = vpow.pop %v1926
  %v1928 = vmul.f32 %v1898, 1.442695
  %v1929 = vpow.pop %v1928
  %v1930 = vmul.f32 %v1899, 1.442695
  %v1931 = vpow.pop %v1930
  %v1932 = vmul.f32 %v1900, 1.442695
  %v1933 = vpow.pop %v1932
  %v1934 = vmul.f32 %v1901, 1.442695
  %v1935 = vpow.pop %v1934
  %v1936 = vmul.f32 %v1902, 1.442695
  %v1937 = vpow.pop %v1936
  %v1938 = vmul.f32 %v1903, 1.442695
  %v1939 = vpow.pop %v1938
  %v1940 = vmul.f32 %v1904, 1.442695
  %v1941 = vpow.pop %v1940
  %v1942 = vmul.f32 %v1905, 1.442695
  %v1943 = vpow.pop %v1942
  %v1944 = vmul.f32 %v1906, 1.442695
  %v1945 = vpow.pop %v1944
  %v1946 = vmul.f32 %v1907, 1.442695
  %v1947 = vpow.pop %v1946
  %v1948 = vmul.f32 %v1908, 1.442695
  %v1949 = vpow.pop %v1948
  %v1950 = vmul.f32 %v1909, 1.442695
  %v1951 = vpow.pop %v1950
  %v1952 = vmul.f32 %v1910, 1.442695
  %v1953 = vpow.pop %v1952
  %v1954 = vmul.f32 %v1911, 1.442695
  %v1955 = vpow.pop %v1954
  %v1956 = vmul.f32 %v1912, 1.442695
  %v1957 = vpow.pop %v1956
  %v1958 = vmul.f32 %v1913, 1.442695
  %v1959 = vpow.pop %v1958
  %v1960 = vmul.f32 %v1914, 1.442695
  %v1961 = vpow.pop %v1960
  %v1962 = vmul.f32 %v1915, 1.442695
  %v1963 = vpow.pop %v1962
  %v1964 = vmul.f32 %v1916, 1.442695
  %v1965 = vpow.pop %v1964
  %v1966 = vmul.f32 %v1917, 1.442695
  %v1967 = vpow.pop %v1966
  %v1968 = vadd.f32 %v1919, 1.0
  %v1969 = vadd.f32 %v1921, 1.0
  %v1970 = vadd.f32 %v1923, 1.0
  %v1971 = vadd.f32 %v1925, 1.0
  %v1972 = vadd.f32 %v1927, 1.0
  %v1973 = vadd.f32 %v1929, 1.0
  %v1974 = vadd.f32 %v1931, 1.0
  %v1975 = vadd.f32 %v1933, 1.0
  %v1976 = vadd.f32 %v1935, 1.0
  %v1977 = vadd.f32 %v1937, 1.0
  %v1978 = vadd.f32 %v1939, 1.0
  %v1979 = vadd.f32 %v1941, 1.0
  %v1980 = vadd.f32 %v1943, 1.0
  %v1981 = vadd.f32 %v1945, 1.0
  %v1982 = vadd.f32 %v1947, 1.0
  %v1983 = vadd.f32 %v1949, 1.0
  %v1984 = vadd.f32 %v1951, 1.0
  %v1985 = vadd.f32 %v1953, 1.0
  %v1986 = vadd.f32 %v1955, 1.0
  %v1987 = vadd.f32 %v1957, 1.0
  %v1988 = vadd.f32 %v1959, 1.0
  %v1989 = vadd.f32 %v1961, 1.0
  %v1990 = vadd.f32 %v1963, 1.0
  %v1991 = vadd.f32 %v1965, 1.0
  %v1992 = vadd.f32 %v1967, 1.0
  %v1993 = vrcp.pop %v1968
  %v1994 = vmul.f32 1.0, %v1993
  %v1995 = vrcp.pop %v1969
  %v1996 = vmul.f32 1.0, %v1995
  %v1997 = vrcp.pop %v1970
  %v1998 = vmul.f32 1.0, %v1997
  %v1999 = vrcp.pop %v1971
  %v2000 = vmul.f32 1.0, %v1999
  %v2001 = vrcp.pop %v1972
  %v2002 = vmul.f32 1.0, %v2001
  %v2003 = vrcp.pop %v1973
  %v2004 = vmul.f32 1.0, %v2003
  %v2005 = vrcp.pop %v1974
  %v2006 = vmul.f32 1.0, %v2005
  %v2007 = vrcp.pop %v1975
  %v2008 = vmul.f32 1.0, %v2007
  %v2009 = vrcp.pop %v1976
  %v2010 = vmul.f32 1.0, %v2009
  %v2011 = vrcp.pop %v1977
  %v2012 = vmul.f32 1.0, %v2011
  %v2013 = vrcp.pop %v1978
  %v2014 = vmul.f32 1.0, %v2013
  %v2015 = vrcp.pop %v1979
  %v2016 = vmul.f32 1.0, %v2015
  %v2017 = vrcp.pop %v1980
  %v2018 = vmul.f32 1.0, %v2017
  %v2019 = vrcp.pop %v1981
  %v2020 = vmul.f32 1.0, %v2019
  %v2021 = vrcp.pop %v1982
  %v2022 = vmul.f32 1.0, %v2021
  %v2023 = vrcp.pop %v1983
  %v2024 = vmul.f32 1.0, %v2023
  %v2025 = vrcp.pop %v1984
  %v2026 = vmul.f32 1.0, %v2025
  %v2027 = vrcp.pop %v1985
  %v2028 = vmul.f32 1.0, %v2027
  %v2029 = vrcp.pop %v1986
  %v2030 = vmul.f32 1.0, %v2029
  %v2031 = vrcp.pop %v1987
  %v2032 = vmul.f32 1.0, %v2031
  %v2033 = vrcp.pop %v1988
  %v2034 = vmul.f32 1.0, %v2033
  %v2035 = vrcp.pop %v1989
  %v2036 = vmul.f32 1.0, %v2035
  %v2037 = vrcp.pop %v1990
  %v2038 = vmul.f32 1.0, %v2037
  %v2039 = vrcp.pop %v1991
  %v2040 = vmul.f32 1.0, %v2039
  %v2041 = vrcp.pop %v1992
  %v2042 = vmul.f32 1.0, %v2041
  %v2043 = vmul.f32 %v1770, %v1994
  %v2044 = vmul.f32 %v1775, %v1996
  %v2045 = vmul.f32 %v1780, %v1998
  %v2046 = vmul.f32 %v1785, %v2000
  %v2047 = vmul.f32 %v1790, %v2002
  %v2048 = vmul.f32 %v1795, %v2004
  %v2049 = vmul.f32 %v1800, %v2006
  %v2050 = vmul.f32 %v1805, %v2008
  %v2051 = vmul.f32 %v1810, %v2010
  %v2052 = vmul.f32 %v1815, %v2012
  %v2053 = vmul.f32 %v1820, %v2014
  %v2054 = vmul.f32 %v1825, %v2016
  %v2055 = vmul.f32 %v1830, %v2018
  %v2056 = vmul.f32 %v1835, %v2020
  %v2057 = vmul.f32 %v1840, %v2022
  %v2058 = vmul.f32 %v1845, %v2024
  %v2059 = vmul.f32 %v1850, %v2026
  %v2060 = vmul.f32 %v1855, %v2028
  %v2061 = vmul.f32 %v1860, %v2030
  %v2062 = vmul.f32 %v1865, %v2032
  %v2063 = vmul.f32 %v1870, %v2034
  %v2064 = vmul.f32 %v1875, %v2036
  %v2065 = vmul.f32 %v1880, %v2038
  %v2066 = vmul.f32 %v1885, %v2040
  %v2067 = vmul.f32 %v1890, %v2042
  %vm2068 = vcmask 31744
  %2069 = vst.msk [vmem:[%s13] sm:$0xff] %vm2068, %v2043
  %2070 = vst.msk [vmem:[%s13 + $0x8] sm:$0xff] %vm2068, %v2044
  %2071 = vst.msk [vmem:[%s13 + $0x10] sm:$0xff] %vm2068, %v2045
  %2072 = vst.msk [vmem:[%s13 + $0x18] sm:$0xff] %vm2068, %v2046
  %2073 = vst.msk [vmem:[%s13 + $0x20] sm:$0xff] %vm2068, %v2047
  %2074 = vst.msk [vmem:[%s13 + $0x28] sm:$0xff] %vm2068, %v2048
  %2075 = vst.msk [vmem:[%s13 + $0x30] sm:$0xff] %vm2068, %v2049
  %2076 = vst.msk [vmem:[%s13 + $0x38] sm:$0xff] %vm2068, %v2050
  %2077 = vst.msk [vmem:[%s13 + $0x40] sm:$0xff] %vm2068, %v2051
  %2078 = vst.msk [vmem:[%s13 + $0x48] sm:$0xff] %vm2068, %v2052
  %2079 = vst.msk [vmem:[%s13 + $0x50] sm:$0xff] %vm2068, %v2053
  %2080 = vst.msk [vmem:[%s13 + $0x58] sm:$0xff] %vm2068, %v2054
  %2081 = vst.msk [vmem:[%s13 + $0x60] sm:$0xff] %vm2068, %v2055
  %2082 = vst.msk [vmem:[%s13 + $0x68] sm:$0xff] %vm2068, %v2056
  %2083 = vst.msk [vmem:[%s13 + $0x70] sm:$0xff] %vm2068, %v2057
  %2084 = vst.msk [vmem:[%s13 + $0x78] sm:$0xff] %vm2068, %v2058
  %2085 = vst.msk [vmem:[%s13 + $0x80] sm:$0xff] %vm2068, %v2059
  %2086 = vst.msk [vmem:[%s13 + $0x88] sm:$0xff] %vm2068, %v2060
  %2087 = vst.msk [vmem:[%s13 + $0x90] sm:$0xff] %vm2068, %v2061
  %2088 = vst.msk [vmem:[%s13 + $0x98] sm:$0xff] %vm2068, %v2062
  %2089 = vst.msk [vmem:[%s13 + $0xa0] sm:$0xff] %vm2068, %v2063
  %2090 = vst.msk [vmem:[%s13 + $0xa8] sm:$0xff] %vm2068, %v2064
  %2091 = vst.msk [vmem:[%s13 + $0xb0] sm:$0xff] %vm2068, %v2065
  %2092 = vst.msk [vmem:[%s13 + $0xb8] sm:$0xff] %vm2068, %v2066
  %2093 = vst.msk [vmem:[%s13 + $0xc0] sm:$0xff] %vm2068, %v2067
  // Predicated region
  $region54: #{tpu_custom_call.1} parent=0 // pred_check
    _
  $region55: #{tpu_custom_call.1} parent=0 // pred_check_branch
    %2095 = sbr.rel (0) target = $region57
  $region56: #{tpu_custom_call.1} parent=0 // pred_region
    _
  $region57: #{tpu_custom_call.1} parent=0 // pred_fallthru
    _
  // Predicated region
  $region58: #{tpu_custom_call.1} parent=0 // pred_check
    _
  $region59: #{tpu_custom_call.1} parent=0 // pred_check_branch
    %2097 = sbr.rel (0) target = $region61
  $region60: #{tpu_custom_call.1} parent=0 // pred_region
    _
  $region61: #{tpu_custom_call.1} parent=0 // pred_fallthru
    _

</llo_original>
